<compile_context>
chip_gen: v7x
topology: tpu7x:2x2x1
jax: 0.10.0
libtpu: 0.0.40
codegen_flags: <defaults>
</compile_context>

<pallas_src>
import functools
import math

import jax
import jax.numpy as jnp
from jax.experimental import pallas as pl
from jax.experimental.pallas import tpu as pltpu


def _round_up(x, m):
    return ((x + m - 1) // m) * m


# ---------------------------------------------------------------------------
# Kernel 1: edge embeddings   edge = Hc^T @ h    (reduction over all nodes)
#   grid = (N_pad // tk,)  -- accumulated in an f32 VMEM scratch.
# ---------------------------------------------------------------------------
def _edge_kernel(hct_ref, h_ref, edge_ref, acc_ref):
    k = pl.program_id(0)

    @pl.when(k == 0)
    def _():
        acc_ref[...] = jnp.zeros_like(acc_ref)

    acc_ref[...] += jnp.dot(hct_ref[...], h_ref[...],
                            preferred_element_type=jnp.float32)

    @pl.when(k == pl.num_programs(0) - 1)
    def _():
        edge_ref[...] = acc_ref[...].astype(edge_ref.dtype)


def edge_embeddings(hct_bf16, h_bf16, *, tk):
    ee, n_pad = hct_bf16.shape
    n2, dp = h_bf16.shape
    assert n_pad == n2 and n_pad % tk == 0
    return pl.pallas_call(
        _edge_kernel,
        out_shape=jax.ShapeDtypeStruct((ee, dp), jnp.bfloat16),
        grid_spec=pltpu.PrefetchScalarGridSpec(
            num_scalar_prefetch=0,
            grid=(n_pad // tk,),
            in_specs=[pl.BlockSpec((ee, tk), lambda k: (0, k)),   # Hc^T cols
                      pl.BlockSpec((tk, dp), lambda k: (k, 0))],  # h rows
            out_specs=pl.BlockSpec((ee, dp), lambda k: (0, 0)),
            scratch_shapes=[pltpu.VMEM((ee, dp), jnp.float32)]),
        compiler_params=pltpu.CompilerParams(
            dimension_semantics=("arbitrary",),
            vmem_limit_bytes=32 * 1024 * 1024),
    )(hct_bf16, h_bf16)


# ---------------------------------------------------------------------------
# Kernel 2: one HCCF layer, row-tiled with K accumulation
#   gcn[i]  = sum_k adj[i,k] @ h[k]       (bf16 MXU, f32 accumulate)
#   hgnn[i] = Hc[i] @ edge                (written once on the last K step)
# ---------------------------------------------------------------------------
def _layer_kernel(adj_ref, h_ref, hc_ref, edge_ref, gcn_ref, hgnn_ref, acc_ref):
    k = pl.program_id(1)

    @pl.when(k == 0)
    def _():
        acc_ref[...] = jnp.zeros_like(acc_ref)

    acc_ref[...] += jnp.dot(adj_ref[...], h_ref[...],
                            preferred_element_type=jnp.float32)

    @pl.when(k == pl.num_programs(1) - 1)
    def _():
        gcn_ref[...] = acc_ref[...]
        hgnn_ref[...] = jnp.dot(hc_ref[...], edge_ref[...],
                                preferred_element_type=jnp.float32)


def hccf_layer(adj_bf16, h_bf16, hc_bf16, edge_bf16, *, tm, tk):
    n_pad, n_pad2 = adj_bf16.shape
    _, dp = h_bf16.shape
    _, ee = hc_bf16.shape
    assert n_pad == n_pad2 and n_pad % tm == 0 and n_pad % tk == 0
    grid = (n_pad // tm, n_pad // tk)
    out_shape = (jax.ShapeDtypeStruct((n_pad, dp), jnp.float32),
                 jax.ShapeDtypeStruct((n_pad, dp), jnp.float32))
    return pl.pallas_call(
        _layer_kernel,
        out_shape=out_shape,
        grid_spec=pltpu.PrefetchScalarGridSpec(
            num_scalar_prefetch=0,
            grid=grid,
            in_specs=[pl.BlockSpec((tm, tk), lambda i, k: (i, k)),   # adj tile
                      pl.BlockSpec((tk, dp), lambda i, k: (k, 0)),   # h rows
                      pl.BlockSpec((tm, ee), lambda i, k: (i, 0)),   # Hc rows
                      pl.BlockSpec((ee, dp), lambda i, k: (0, 0))],  # edge (resident)
            out_specs=(pl.BlockSpec((tm, dp), lambda i, k: (i, 0)),
                       pl.BlockSpec((tm, dp), lambda i, k: (i, 0))),
            scratch_shapes=[pltpu.VMEM((tm, dp), jnp.float32)]),
        compiler_params=pltpu.CompilerParams(
            dimension_semantics=("parallel", "arbitrary"),
            vmem_limit_bytes=32 * 1024 * 1024),
    )(adj_bf16, h_bf16, hc_bf16, edge_bf16)


# ---------------------------------------------------------------------------
# HCCFEncoder.forward (eval mode)
# ---------------------------------------------------------------------------
def hccf_forward(params, norm_adj, *, n_users, n_layers, keep_rate=1.0,
                 tm=256, tk=512):
    # Eval-mode semantics only (edge-drop / dropout are identity).
    assert keep_rate == 1.0  # TODO(synk): keep_rate<1 edge dropout unimplemented
    assert tm % 8 == 0 and tk % 128 == 0

    user_emb = params['user_emb'].astype(jnp.float32)
    item_emb = params['item_emb'].astype(jnp.float32)
    nu, d = user_emb.shape
    ni = item_emb.shape[0]
    n = nu + ni
    e = params['user_w'].shape[1]

    dp = _round_up(max(d, 1), 128)           # lane-dense feature dim
    ee = _round_up(max(2 * e, 1), 128)       # combined (user|item) hyper-edge dim
    n_pad = _round_up(n, math.lcm(tm, tk))   # node dim divisible by both tiles

    # Padded dense adjacency, bf16 at the kernel boundary.
    adj = jnp.zeros((n_pad, n_pad), jnp.float32).at[:n, :n].set(
        norm_adj.astype(jnp.float32))
    adj_bf16 = adj.astype(jnp.bfloat16)

    # Initial embeddings (padded; f32 carried between layers in the wrapper).
    emb0 = jnp.concatenate([user_emb, item_emb], axis=0)           # (n, d)
    h0 = jnp.zeros((n_pad, dp), jnp.float32).at[:n, :d].set(emb0)

    # Hyper projections (tiny; plain XLA) and combined Hc / Hc^T.
    hyper_uu = user_emb @ params['user_w'].astype(jnp.float32)     # (nu, e)
    hyper_ii = item_emb @ params['item_w'].astype(jnp.float32)     # (ni, e)
    hc = jnp.zeros((n_pad, ee), jnp.float32)
    hc = hc.at[:nu, :e].set(hyper_uu)
    hc = hc.at[nu:n, e:2 * e].set(hyper_ii)
    hc_bf16 = hc.astype(jnp.bfloat16)
    hct_bf16 = hc_bf16.T                     # one-time transpose, reused per layer

    hidden = [h0]
    gcn_hidden = []
    hgnn_hidden = []
    for _ in range(n_layers):
        h_bf16 = hidden[-1].astype(jnp.bfloat16)
        edge = edge_embeddings(hct_bf16, h_bf16, tk=tk)            # (ee, dp) bf16
        gcn, hgnn = hccf_layer(adj_bf16, h_bf16, hc_bf16, edge, tm=tm, tk=tk)
        gcn_hidden.append(gcn)
        hgnn_hidden.append(hgnn)
        hidden.append(gcn + hgnn)            # fused XLA add (not a kernel output)

    final = sum(hidden)                                            # (n_pad, dp) f32
    user_out = final[:nu, :d]
    item_out = final[nu:n, :d]
    gcn_hidden = [x[:n, :d] for x in gcn_hidden]
    hgnn_hidden = [x[:n, :d] for x in hgnn_hidden]
    return user_out, item_out, gcn_hidden, hgnn_hidden


# ---------------------------------------------------------------------------
# Pure-JAX reference (mirrors the PyTorch forward) and test harness
# ---------------------------------------------------------------------------
def _reference_forward(params, norm_adj, n_users, n_layers):
    emb = jnp.concatenate([params['user_emb'], params['item_emb']], 0)
    hidden = [emb]
    gcn_hidden, hgnn_hidden = [], []
    hyper_uu = params['user_emb'] @ params['user_w']
    hyper_ii = params['item_emb'] @ params['item_w']
    for _ in range(n_layers):
        h = hidden[-1]
        gcn = norm_adj @ h
        hu = hyper_uu @ (hyper_uu.T @ h[:n_users])
        hi = hyper_ii @ (hyper_ii.T @ h[n_users:])
        hg = jnp.concatenate([hu, hi], 0)
        gcn_hidden.append(gcn)
        hgnn_hidden.append(hg)
        hidden.append(gcn + hg)
    out = sum(hidden)
    return out[:n_users], out[n_users:], gcn_hidden, hgnn_hidden


def _nmax_err(a, b):
    return float(jnp.max(jnp.abs(a - b)) / (jnp.max(jnp.abs(b)) + 1e-8))


if __name__ == "__main__":
    n_users, n_items = 100, 180            # N = 280 nodes (padded to 384 in-kernel)
    latent_size = 32                       # embedding_size
    hyper_dim = 32                         # n_edges == hyper_dim
    n_layers = 2

    key = jax.random.PRNGKey(0)
    k1, k2, k3, k4, k5 = jax.random.split(key, 5)
    glorot = jax.nn.initializers.glorot_uniform()   # == xavier_uniform_

    params = {
        'user_emb': glorot(k1, (n_users, latent_size), jnp.float32),
        'item_emb': glorot(k2, (n_items, latent_size), jnp.float32),
        'user_w':   glorot(k3, (latent_size, hyper_dim), jnp.float32),
        'item_w':   glorot(k4, (latent_size, hyper_dim), jnp.float32),
    }

    # Deterministic dense normalized bipartite adjacency (stands in for data.norm_adj).
    R = (jax.random.uniform(k5, (n_users, n_items)) < 0.1).astype(jnp.float32)
    N = n_users + n_items
    A = jnp.zeros((N, N), jnp.float32)
    A = A.at[:n_users, n_users:].set(R)
    A = A.at[n_users:, :n_users].set(R.T)
    deg = A.sum(axis=1)
    d_inv_sqrt = jnp.where(deg > 0, 1.0 / jnp.sqrt(jnp.maximum(deg, 1e-12)), 0.0)
    norm_adj = A * d_inv_sqrt[:, None] * d_inv_sqrt[None, :]

    fwd = jax.jit(functools.partial(hccf_forward, n_users=n_users,
                                    n_layers=n_layers, keep_rate=1.0,
                                    tm=64, tk=128))
    user_out, item_out, gcn_hidden, hgnn_hidden = fwd(params, norm_adj)
    jax.block_until_ready((user_out, item_out, gcn_hidden, hgnn_hidden))

    assert user_out.shape == (n_users, latent_size)
    assert item_out.shape == (n_items, latent_size)
    assert len(gcn_hidden) == n_layers and len(hgnn_hidden) == n_layers

    # Numerical check vs a pure-f32 JAX reference (bf16 kernel inputs -> loose tol).
    ru, ri, rg, rh = _reference_forward(params, norm_adj, n_users, n_layers)
    assert _nmax_err(user_out, ru) < 5e-2
    assert _nmax_err(item_out, ri) < 5e-2
    for a, b in zip(gcn_hidden, rg):
        assert _nmax_err(a, b) < 5e-2
    for a, b in zip(hgnn_hidden, rh):
        assert _nmax_err(a, b) < 5e-2

    print("KERNEL_OK")
</pallas_src>

<mosaic_0001>
module attributes {stable_mosaic.version = 11 : i64} {
  func.func @_edge_kernel(%arg0: i32, %arg1: memref<128x128xbf16, #tpu.memory_space<vmem>>, %arg2: memref<128x128xbf16, #tpu.memory_space<vmem>>, %arg3: memref<128x128xbf16, #tpu.memory_space<vmem>>, %arg4: memref<128x128xf32, #tpu.memory_space<vmem>>) attributes {dimension_semantics = [#tpu.dimension_semantics<arbitrary>], iteration_bounds = array<i64: 3>, scalar_prefetch = 0 : i64, scratch_operands = 1 : i64, tpu.core_type = #tpu.core_type<tc>, window_params = [{transform_indices = @transform_0, window_bounds = array<i64: 128, 128>}, {transform_indices = @transform_1, window_bounds = array<i64: 128, 128>}, {pipeline_mode = #tpu.pipeline_mode<synchronous>, transform_indices = @transform_2, window_bounds = array<i64: 128, 128>}]} {
    %c0_i32 = arith.constant 0 : i32
    %0 = arith.cmpi eq, %arg0, %c0_i32 : i32
    %1 = arith.extui %0 : i1 to i32
    %c0_i32_0 = arith.constant 0 : i32
    %2 = arith.cmpi ne, %1, %c0_i32_0 : i32
    scf.if %2 {
      %cst_9 = arith.constant 0.000000e+00 : f32
      %12 = vector.broadcast %cst_9 : f32 to vector<128x128xf32>
      %c0_10 = arith.constant 0 : index
      %c0_11 = arith.constant 0 : index
      %13 = vector.load %arg4[%c0_10, %c0_11] : memref<128x128xf32, #tpu.memory_space<vmem>>, vector<128x128xf32>
      tpu.vector_store %arg4[%c0_10, %c0_11], %12 {strides = array<i32>} : memref<128x128xf32, #tpu.memory_space<vmem>>, vector<128x128xf32>,
    } else {
    }
    %c0 = arith.constant 0 : index
    %c0_1 = arith.constant 0 : index
    %3 = vector.load %arg4[%c0, %c0_1] : memref<128x128xf32, #tpu.memory_space<vmem>>, vector<128x128xf32>
    %c0_2 = arith.constant 0 : index
    %c0_3 = arith.constant 0 : index
    %4 = vector.load %arg1[%c0_2, %c0_3] : memref<128x128xbf16, #tpu.memory_space<vmem>>, vector<128x128xbf16>
    %c0_4 = arith.constant 0 : index
    %c0_5 = arith.constant 0 : index
    %5 = vector.load %arg2[%c0_4, %c0_5] : memref<128x128xbf16, #tpu.memory_space<vmem>>, vector<128x128xbf16>
    %cst = arith.constant dense<0.000000e+00> : vector<128x128xf32>
    %6 = tpu.matmul %4, %5, %cst {dimension_numbers = #tpu.dot_dimension_numbers<[1], [0], [0], [1], [0, 0, 1, 1], [], []>} : vector<128x128xbf16>, vector<128x128xbf16>, vector<128x128xf32> -> vector<128x128xf32>
    %7 = arith.addf %3, %6 : vector<128x128xf32>
    %c0_6 = arith.constant 0 : index
    %c0_7 = arith.constant 0 : index
    %8 = vector.load %arg4[%c0_6, %c0_7] : memref<128x128xf32, #tpu.memory_space<vmem>>, vector<128x128xf32>
    tpu.vector_store %arg4[%c0_6, %c0_7], %7 {strides = array<i32>} : memref<128x128xf32, #tpu.memory_space<vmem>>, vector<128x128xf32>,
    %c2_i32 = arith.constant 2 : i32
    %9 = arith.cmpi eq, %arg0, %c2_i32 : i32
    %10 = arith.extui %9 : i1 to i32
    %c0_i32_8 = arith.constant 0 : i32
    %11 = arith.cmpi ne, %10, %c0_i32_8 : i32
    scf.if %11 {
      %c0_9 = arith.constant 0 : index
      %c0_10 = arith.constant 0 : index
      %12 = vector.load %arg4[%c0_9, %c0_10] : memref<128x128xf32, #tpu.memory_space<vmem>>, vector<128x128xf32>
      %13 = arith.truncf %12 : vector<128x128xf32> to vector<128x128xbf16>
      %c0_11 = arith.constant 0 : index
      %c0_12 = arith.constant 0 : index
      %14 = vector.load %arg3[%c0_11, %c0_12] : memref<128x128xbf16, #tpu.memory_space<vmem>>, vector<128x128xbf16>
      tpu.vector_store %arg3[%c0_11, %c0_12], %13 {strides = array<i32>} : memref<128x128xbf16, #tpu.memory_space<vmem>>, vector<128x128xbf16>,
    } else {
    }
    return
  }
  func.func @transform_0(%arg0: i32) -> (i32, i32) {
    %c0_i32 = arith.constant 0 : i32
    %c0_i32_0 = arith.constant 0 : i32
    return %c0_i32, %arg0 : i32, i32
  }
  func.func @transform_1(%arg0: i32) -> (i32, i32) {
    %c0_i32 = arith.constant 0 : i32
    %c0_i32_0 = arith.constant 0 : i32
    return %arg0, %c0_i32 : i32, i32
  }
  func.func @transform_2(%arg0: i32) -> (i32, i32) {
    %c0_i32 = arith.constant 0 : i32
    %c0_i32_0 = arith.constant 0 : i32
    %c0_i32_1 = arith.constant 0 : i32
    return %c0_i32, %c0_i32_0 : i32, i32
  }
}

module attributes {stable_mosaic.version = 11 : i64} {
  func.func @_layer_kernel(%arg0: i32, %arg1: i32, %arg2: memref<64x128xbf16, #tpu.memory_space<vmem>>, %arg3: memref<128x128xbf16, #tpu.memory_space<vmem>>, %arg4: memref<64x128xbf16, #tpu.memory_space<vmem>>, %arg5: memref<128x128xbf16, #tpu.memory_space<vmem>>, %arg6: memref<64x128xf32, #tpu.memory_space<vmem>>, %arg7: memref<64x128xf32, #tpu.memory_space<vmem>>, %arg8: memref<64x128xf32, #tpu.memory_space<vmem>>) attributes {dimension_semantics = [#tpu.dimension_semantics<parallel>, #tpu.dimension_semantics<arbitrary>], iteration_bounds = array<i64: 6, 3>, scalar_prefetch = 0 : i64, scratch_operands = 1 : i64, tpu.core_type = #tpu.core_type<tc>, window_params = [{transform_indices = @transform_0, window_bounds = array<i64: 64, 128>}, {transform_indices = @transform_1, window_bounds = array<i64: 128, 128>}, {transform_indices = @transform_2, window_bounds = array<i64: 64, 128>}, {pipeline_mode = #tpu.pipeline_mode<synchronous>, transform_indices = @transform_3, window_bounds = array<i64: 128, 128>}, {transform_indices = @transform_4, window_bounds = array<i64: 64, 128>}, {transform_indices = @transform_5, window_bounds = array<i64: 64, 128>}]} {
    %c0_i32 = arith.constant 0 : i32
    %0 = arith.cmpi eq, %arg1, %c0_i32 : i32
    %1 = arith.extui %0 : i1 to i32
    %c0_i32_0 = arith.constant 0 : i32
    %2 = arith.cmpi ne, %1, %c0_i32_0 : i32
    scf.if %2 {
      %cst_9 = arith.constant 0.000000e+00 : f32
      %12 = vector.broadcast %cst_9 : f32 to vector<64x128xf32>
      %c0_10 = arith.constant 0 : index
      %c0_11 = arith.constant 0 : index
      %13 = vector.load %arg8[%c0_10, %c0_11] : memref<64x128xf32, #tpu.memory_space<vmem>>, vector<64x128xf32>
      tpu.vector_store %arg8[%c0_10, %c0_11], %12 {strides = array<i32>} : memref<64x128xf32, #tpu.memory_space<vmem>>, vector<64x128xf32>,
    } else {
    }
    %c0 = arith.constant 0 : index
    %c0_1 = arith.constant 0 : index
    %3 = vector.load %arg8[%c0, %c0_1] : memref<64x128xf32, #tpu.memory_space<vmem>>, vector<64x128xf32>
    %c0_2 = arith.constant 0 : index
    %c0_3 = arith.constant 0 : index
    %4 = vector.load %arg2[%c0_2, %c0_3] : memref<64x128xbf16, #tpu.memory_space<vmem>>, vector<64x128xbf16>
    %c0_4 = arith.constant 0 : index
    %c0_5 = arith.constant 0 : index
    %5 = vector.load %arg3[%c0_4, %c0_5] : memref<128x128xbf16, #tpu.memory_space<vmem>>, vector<128x128xbf16>
    %cst = arith.constant dense<0.000000e+00> : vector<64x128xf32>
    %6 = tpu.matmul %4, %5, %cst {dimension_numbers = #tpu.dot_dimension_numbers<[1], [0], [0], [1], [0, 0, 1, 1], [], []>} : vector<64x128xbf16>, vector<128x128xbf16>, vector<64x128xf32> -> vector<64x128xf32>
    %7 = arith.addf %3, %6 : vector<64x128xf32>
    %c0_6 = arith.constant 0 : index
    %c0_7 = arith.constant 0 : index
    %8 = vector.load %arg8[%c0_6, %c0_7] : memref<64x128xf32, #tpu.memory_space<vmem>>, vector<64x128xf32>
    tpu.vector_store %arg8[%c0_6, %c0_7], %7 {strides = array<i32>} : memref<64x128xf32, #tpu.memory_space<vmem>>, vector<64x128xf32>,
    %c2_i32 = arith.constant 2 : i32
    %9 = arith.cmpi eq, %arg1, %c2_i32 : i32
    %10 = arith.extui %9 : i1 to i32
    %c0_i32_8 = arith.constant 0 : i32
    %11 = arith.cmpi ne, %10, %c0_i32_8 : i32
    scf.if %11 {
      %c0_9 = arith.constant 0 : index
      %c0_10 = arith.constant 0 : index
      %12 = vector.load %arg8[%c0_9, %c0_10] : memref<64x128xf32, #tpu.memory_space<vmem>>, vector<64x128xf32>
      %c0_11 = arith.constant 0 : index
      %c0_12 = arith.constant 0 : index
      %13 = vector.load %arg6[%c0_11, %c0_12] : memref<64x128xf32, #tpu.memory_space<vmem>>, vector<64x128xf32>
      tpu.vector_store %arg6[%c0_11, %c0_12], %12 {strides = array<i32>} : memref<64x128xf32, #tpu.memory_space<vmem>>, vector<64x128xf32>,
      %c0_13 = arith.constant 0 : index
      %c0_14 = arith.constant 0 : index
      %14 = vector.load %arg4[%c0_13, %c0_14] : memref<64x128xbf16, #tpu.memory_space<vmem>>, vector<64x128xbf16>
      %c0_15 = arith.constant 0 : index
      %c0_16 = arith.constant 0 : index
      %15 = vector.load %arg5[%c0_15, %c0_16] : memref<128x128xbf16, #tpu.memory_space<vmem>>, vector<128x128xbf16>
      %cst_17 = arith.constant dense<0.000000e+00> : vector<64x128xf32>
      %16 = tpu.matmul %14, %15, %cst_17 {dimension_numbers = #tpu.dot_dimension_numbers<[1], [0], [0], [1], [0, 0, 1, 1], [], []>} : vector<64x128xbf16>, vector<128x128xbf16>, vector<64x128xf32> -> vector<64x128xf32>
      %c0_18 = arith.constant 0 : index
      %c0_19 = arith.constant 0 : index
      %17 = vector.load %arg7[%c0_18, %c0_19] : memref<64x128xf32, #tpu.memory_space<vmem>>, vector<64x128xf32>
      tpu.vector_store %arg7[%c0_18, %c0_19], %16 {strides = array<i32>} : memref<64x128xf32, #tpu.memory_space<vmem>>, vector<64x128xf32>,
    } else {
    }
    return
  }
  func.func @transform_0(%arg0: i32, %arg1: i32) -> (i32, i32) {
    %c0_i32 = arith.constant 0 : i32
    return %arg0, %arg1 : i32, i32
  }
  func.func @transform_1(%arg0: i32, %arg1: i32) -> (i32, i32) {
    %c0_i32 = arith.constant 0 : i32
    %c0_i32_0 = arith.constant 0 : i32
    return %arg1, %c0_i32 : i32, i32
  }
  func.func @transform_2(%arg0: i32, %arg1: i32) -> (i32, i32) {
    %c0_i32 = arith.constant 0 : i32
    %c0_i32_0 = arith.constant 0 : i32
    return %arg0, %c0_i32 : i32, i32
  }
  func.func @transform_3(%arg0: i32, %arg1: i32) -> (i32, i32) {
    %c0_i32 = arith.constant 0 : i32
    %c0_i32_0 = arith.constant 0 : i32
    %c0_i32_1 = arith.constant 0 : i32
    return %c0_i32, %c0_i32_0 : i32, i32
  }
  func.func @transform_4(%arg0: i32, %arg1: i32) -> (i32, i32) {
    %c0_i32 = arith.constant 0 : i32
    %c0_i32_0 = arith.constant 0 : i32
    return %arg0, %c0_i32 : i32, i32
  }
  func.func @transform_5(%arg0: i32, %arg1: i32) -> (i32, i32) {
    %c0_i32 = arith.constant 0 : i32
    %c0_i32_0 = arith.constant 0 : i32
    return %arg0, %c0_i32 : i32, i32
  }
}

</mosaic_0001>

<llo_original>
// kernel: hccf_forward.4
$region0: #{hccf_forward.4}
  #allocation0 [shape = 'u32[]', space=smem, size = 0x4, offset = 0x4, fixed_abs, tag = 'smem constant byte address 0x4 - core index']
  #allocation1 [shape = 'u32[144,128]{1,0:T(1,128)}', space=vmem, size = 0x12000, scoped, tag = 'internal scratch']
  #allocation2 [shape = 'f32[128,128]{1,0:T(8,128)}', space=vmem, size = 0x10000, scoped, tag = 'scratch operand']
  %s0 = inlined_call_operand.vmem [shape: bf16[128,384], index: 0, kind: input, shape index: {}]
  %s1 = inlined_call_operand.vmem [shape: bf16[384,128], index: 1, kind: input, shape index: {}]
  %s2 = inlined_call_operand.vmem [shape: bf16[128,128], index: 2, kind: output, shape index: {}]
  %s3 = sld [smem:[#allocation0]]
  $region90: #{hccf_forward.4} parent=0
    _
  %s5 = ssub.s32 1, %s3
  %s6 = scalar_select 0, %s5, %s3
  $region1: #{hccf_forward.4} parent=0
    #allocation3 [shape = 'u8[65536]{0}', space=vmem, size = 0x10000, scoped, tag = 'input window, operand 0']
    loop: start=0, step=1, limit=5
    $region2: #{hccf_forward.4} parent=1 // loop_pre_header
      _
    $region3: #{hccf_forward.4} parent=1 // loop_header
      %s8 = sphi 0, %s12
      %p9 = scmp.ge.s32.totalorder %s8, 5
      %s18 = sphi 0, %s20
      %s21 = sphi 0, %s18
      %s22 = sphi 0, %s21
      %s38 = sphi 0, %s22
      %s44 = sphi 0, %s46
      %s47 = sphi 0, %s44
      %s48 = sphi 0, %s47
      %s64 = sphi 0, %s48
      %s68 = sphi 0, %s68
      %s70 = sphi 0, %s68
      %s71 = sphi 0, %s70
      %s85 = sphi 0, %s71
    $region4: #{hccf_forward.4} parent=1 // loop_header_branch
      %11 = sbr.rel (%p9) target = $region8
    $region5: #{hccf_forward.4} parent=1 // loop_body
      %s13 = ssub.s32 %s8, 1
      %s14 = ssub.s32 %s8, 2
      %s15 = sadd.s32 %s8, 1
      %s16 = ssub.s32 %s8, %s15
      %p17 = scmp.eq.s32.totalorder %s16, 0
      %s19 = sadd.s32 %s18, 1
      %s20 = scalar_select %p17, %s18, %s19
      %p23 = pneg %p17
      %p24 = scmp.eq.s32.totalorder %s8, 2
      %p25 = por %p23, %p24
      %p26 = scmp.ne.s32.totalorder %s18, %s21
      %p27 = scmp.eq.s32.totalorder %s8, 0
      %p28 = por %p26, %p27
      %p29 = scmp.ne.s32.totalorder %s18, %s21
      %p30 = scmp.eq.s32.totalorder %s13, 2
      %p31 = por %p29, %p30
      %p32 = scmp.ne.s32.totalorder %s21, %s22
      %p33 = scmp.eq.s32.totalorder %s13, 0
      %p34 = por %p32, %p33
      %p35 = scmp.ne.s32.totalorder %s21, %s22
      %p36 = scmp.eq.s32.totalorder %s14, 2
      %p37 = por %p35, %p36
      %p39 = scmp.ne.s32.totalorder %s22, %s38
      %p40 = scmp.eq.s32.totalorder %s14, 0
      %p41 = por %p39, %p40
      %s42 = ssub.s32 %s8, %s15
      %p43 = scmp.eq.s32.totalorder %s42, 0
      %s45 = sadd.s32 %s44, 1
      %s46 = scalar_select %p43, %s44, %s45
      %p49 = pneg %p43
      %p50 = scmp.eq.s32.totalorder %s8, 2
      %p51 = por %p49, %p50
      %p52 = scmp.ne.s32.totalorder %s44, %s47
      %p53 = scmp.eq.s32.totalorder %s8, 0
      %p54 = por %p52, %p53
      %p55 = scmp.ne.s32.totalorder %s44, %s47
      %p56 = scmp.eq.s32.totalorder %s13, 2
      %p57 = por %p55, %p56
      %p58 = scmp.ne.s32.totalorder %s47, %s48
      %p59 = scmp.eq.s32.totalorder %s13, 0
      %p60 = por %p58, %p59
      %p61 = scmp.ne.s32.totalorder %s47, %s48
      %p62 = scmp.eq.s32.totalorder %s14, 2
      %p63 = por %p61, %p62
      %p65 = scmp.ne.s32.totalorder %s48, %s64
      %p66 = scmp.eq.s32.totalorder %s14, 0
      %p67 = por %p65, %p66
      %s69 = sadd.s32 %s68, 1
      %p72 = scmp.eq.s32.totalorder %s8, 2
      %p73 = scmp.ne.s32.totalorder %s68, %s70
      %p74 = scmp.eq.s32.totalorder %s8, 0
      %p75 = por %p73, %p74
      %p76 = scmp.ne.s32.totalorder %s68, %s70
      %p77 = scmp.eq.s32.totalorder %s13, 2
      %p78 = por %p76, %p77
      %p79 = scmp.ne.s32.totalorder %s70, %s71
      %p80 = scmp.eq.s32.totalorder %s13, 0
      %p81 = por %p79, %p80
      %p82 = scmp.ne.s32.totalorder %s70, %s71
      %p83 = scmp.eq.s32.totalorder %s14, 2
      %p84 = por %p82, %p83
      %p86 = scmp.ne.s32.totalorder %s71, %s85
      %p87 = scmp.eq.s32.totalorder %s14, 0
      %p88 = por %p86, %p87
      %p89 = scmp.le.s32.totalorder 1, %s8
      %p90 = scmp.lt.s32.totalorder %s8, 4
      %p91 = pnand %p89, %p90
      %p92 = pneg %p91
      // Predicated region
      $region9: #{hccf_forward.4} parent=5 // pred_check
        _
      $region10: #{hccf_forward.4} parent=5 // pred_check_branch
        %94 = sbr.rel (%p91) target = $region12
      $region11: #{hccf_forward.4} parent=5 // pred_region
        %s95 = ssub.s32 %s8, 1
      $region12: #{hccf_forward.4} parent=5 // pred_fallthru
        _
      %p96 = scmp.lt.s32.totalorder %s8, 3
      // Predicated region
      $region13: #{hccf_forward.4} parent=5 // pred_check
        %p97 = pneg %p96
      $region14: #{hccf_forward.4} parent=5 // pred_check_branch
        %99 = sbr.rel (%p97) target = $region16
      $region15: #{hccf_forward.4} parent=5 // pred_region
        // Predicated region
        $region17: #{hccf_forward.4} parent=15 // pred_check
          %p100 = pneg %p28
        $region18: #{hccf_forward.4} parent=15 // pred_check_branch
          %102 = sbr.rel (%p100) target = $region20
        $region19: #{hccf_forward.4} parent=15 // pred_region
          %s103 = sand.u32 %s18, 1
          %s104 = sand.u32 %s18, 1
          %s105 = smul.addr %s104, 64
          %s106 = scalar_lea.vmem [#allocation3], %s105
          %s107 = smul.addr %s8, 4
          %s108 = scalar_lea.vmem %s0, %s107
          // Predicated region
          $region21: #{hccf_forward.4} parent=19 // pred_check
            _
          $region22: #{hccf_forward.4} parent=19 // pred_check_branch
            %110 = sbr.rel (0) target = $region24
          $region23: #{hccf_forward.4} parent=19 // pred_region
            // Predicated region
            $region25: #{hccf_forward.4} parent=23 // pred_check
              _
            $region26: #{hccf_forward.4} parent=23 // pred_check_branch
              %112 = sbr.rel target = $region28
            $region27: #{hccf_forward.4} parent=23 // pred_region
              // Predicated region
              $region40: #{hccf_forward.4} parent=27 // pred_check
                _
              $region41: #{hccf_forward.4} parent=27 // pred_check_branch
                %157 = sbr.rel (0) target = $region43
              $region42: #{hccf_forward.4} parent=27 // pred_region
                loop: start=0, step=1, limit=1
                $region44: #{hccf_forward.4} parent=42 // loop_pre_header
                  _
                $region45: #{hccf_forward.4} parent=42 // loop_header
                  %s159 = sphi 0, %s163
                  %p160 = scmp.ge.s32.totalorder %s159, 1
                  %s164 = sphi %s108, %s108
                  %s165 = sphi %s106, %s106
                $region46: #{hccf_forward.4} parent=42 // loop_header_branch
                  %162 = sbr.rel (%p160) target = $region50
                $region47: #{hccf_forward.4} parent=42 // loop_body
                  _
                $region48: #{hccf_forward.4} parent=42 // loop_footer
                  %s163 = sadd.s32 1, %s159
                $region49: #{hccf_forward.4} parent=42 // loop_footer_branch
                  %158 = sbr.rel target = $region45
                $region50: #{hccf_forward.4} parent=42 // loop_exit
                  _
                loop: start=0, step=1, limit=1
                $region51: #{hccf_forward.4} parent=42 // loop_pre_header
                  _
                $region52: #{hccf_forward.4} parent=42 // loop_header
                  %s168 = sphi 0, %s172
                  %p169 = scmp.ge.s32.totalorder %s168, 1
                  %s173 = sphi %s108, %s108
                  %s174 = sphi %s106, %s106
                $region53: #{hccf_forward.4} parent=42 // loop_header_branch
                  %171 = sbr.rel (%p169) target = $region57
                $region54: #{hccf_forward.4} parent=42 // loop_body
                  %v175 = vld [vmem:[%s173] sm:$0xf]
                  %176 = vst [vmem:[%s174] sm:$0xf] %v175
                  %v177 = vld [vmem:[%s173 + $0xc] sm:$0xf]
                  %178 = vst [vmem:[%s174 + $0x4] sm:$0xf] %v177
                  %v179 = vld [vmem:[%s173 + $0x18] sm:$0xf]
                  %180 = vst [vmem:[%s174 + $0x8] sm:$0xf] %v179
                  %v181 = vld [vmem:[%s173 + $0x24] sm:$0xf]
                  %182 = vst [vmem:[%s174 + $0xc] sm:$0xf] %v181
                  %v183 = vld [vmem:[%s173 + $0x30] sm:$0xf]
                  %184 = vst [vmem:[%s174 + $0x10] sm:$0xf] %v183
                  %v185 = vld [vmem:[%s173 + $0x3c] sm:$0xf]
                  %186 = vst [vmem:[%s174 + $0x14] sm:$0xf] %v185
                  %v187 = vld [vmem:[%s173 + $0x48] sm:$0xf]
                  %188 = vst [vmem:[%s174 + $0x18] sm:$0xf] %v187
                  %v189 = vld [vmem:[%s173 + $0x54] sm:$0xf]
                  %190 = vst [vmem:[%s174 + $0x1c] sm:$0xf] %v189
                  %v191 = vld [vmem:[%s173 + $0x60] sm:$0xf]
                  %192 = vst [vmem:[%s174 + $0x20] sm:$0xf] %v191
                  %v193 = vld [vmem:[%s173 + $0x6c] sm:$0xf]
                  %194 = vst [vmem:[%s174 + $0x24] sm:$0xf] %v193
                  %v195 = vld [vmem:[%s173 + $0x78] sm:$0xf]
                  %196 = vst [vmem:[%s174 + $0x28] sm:$0xf] %v195
                  %v197 = vld [vmem:[%s173 + $0x84] sm:$0xf]
                  %198 = vst [vmem:[%s174 + $0x2c] sm:$0xf] %v197
                  %v199 = vld [vmem:[%s173 + $0x90] sm:$0xf]
                  %200 = vst [vmem:[%s174 + $0x30] sm:$0xf] %v199
                  %v201 = vld [vmem:[%s173 + $0x9c] sm:$0xf]
                  %202 = vst [vmem:[%s174 + $0x34] sm:$0xf] %v201
                  %v203 = vld [vmem:[%s173 + $0xa8] sm:$0xf]
                  %204 = vst [vmem:[%s174 + $0x38] sm:$0xf] %v203
                  %v205 = vld [vmem:[%s173 + $0xb4] sm:$0xf]
                  %206 = vst [vmem:[%s174 + $0x3c] sm:$0xf] %v205
                $region55: #{hccf_forward.4} parent=42 // loop_footer
                  %s172 = sadd.s32 1, %s168
                $region56: #{hccf_forward.4} parent=42 // loop_footer_branch
                  %167 = sbr.rel target = $region52
                $region57: #{hccf_forward.4} parent=42 // loop_exit
                  _
              $region43: #{hccf_forward.4} parent=27 // pred_fallthru
                _
            $region28: #{hccf_forward.4} parent=23 // pred_fallthru
              _
            // Predicated region
            $region29: #{hccf_forward.4} parent=23 // pred_check
              _
            $region30: #{hccf_forward.4} parent=23 // pred_check_branch
              %114 = sbr.rel (0) target = $region32
            $region31: #{hccf_forward.4} parent=23 // pred_region
              loop: start=0, step=1, limit=1
              $region33: #{hccf_forward.4} parent=31 // loop_pre_header
                _
              $region34: #{hccf_forward.4} parent=31 // loop_header
                %s117 = sphi 0, %s121
                %p118 = scmp.ge.s32.totalorder %s117, 1
                %s122 = sphi %s108, %s108
                %s123 = sphi %s106, %s106
              $region35: #{hccf_forward.4} parent=31 // loop_header_branch
                %120 = sbr.rel (%p118) target = $region39
              $region36: #{hccf_forward.4} parent=31 // loop_body
                %v124 = vld [vmem:[%s122] sm:$0xf]
                %125 = vst [vmem:[%s123] sm:$0xf] %v124
                %v126 = vld [vmem:[%s122 + $0xc] sm:$0xf]
                %127 = vst [vmem:[%s123 + $0x4] sm:$0xf] %v126
                %v128 = vld [vmem:[%s122 + $0x18] sm:$0xf]
                %129 = vst [vmem:[%s123 + $0x8] sm:$0xf] %v128
                %v130 = vld [vmem:[%s122 + $0x24] sm:$0xf]
                %131 = vst [vmem:[%s123 + $0xc] sm:$0xf] %v130
                %v132 = vld [vmem:[%s122 + $0x30] sm:$0xf]
                %133 = vst [vmem:[%s123 + $0x10] sm:$0xf] %v132
                %v134 = vld [vmem:[%s122 + $0x3c] sm:$0xf]
                %135 = vst [vmem:[%s123 + $0x14] sm:$0xf] %v134
                %v136 = vld [vmem:[%s122 + $0x48] sm:$0xf]
                %137 = vst [vmem:[%s123 + $0x18] sm:$0xf] %v136
                %v138 = vld [vmem:[%s122 + $0x54] sm:$0xf]
                %139 = vst [vmem:[%s123 + $0x1c] sm:$0xf] %v138
                %v140 = vld [vmem:[%s122 + $0x60] sm:$0xf]
                %141 = vst [vmem:[%s123 + $0x20] sm:$0xf] %v140
                %v142 = vld [vmem:[%s122 + $0x6c] sm:$0xf]
                %143 = vst [vmem:[%s123 + $0x24] sm:$0xf] %v142
                %v144 = vld [vmem:[%s122 + $0x78] sm:$0xf]
                %145 = vst [vmem:[%s123 + $0x28] sm:$0xf] %v144
                %v146 = vld [vmem:[%s122 + $0x84] sm:$0xf]
                %147 = vst [vmem:[%s123 + $0x2c] sm:$0xf] %v146
                %v148 = vld [vmem:[%s122 + $0x90] sm:$0xf]
                %149 = vst [vmem:[%s123 + $0x30] sm:$0xf] %v148
                %v150 = vld [vmem:[%s122 + $0x9c] sm:$0xf]
                %151 = vst [vmem:[%s123 + $0x34] sm:$0xf] %v150
                %v152 = vld [vmem:[%s122 + $0xa8] sm:$0xf]
                %153 = vst [vmem:[%s123 + $0x38] sm:$0xf] %v152
                %v154 = vld [vmem:[%s122 + $0xb4] sm:$0xf]
                %155 = vst [vmem:[%s123 + $0x3c] sm:$0xf] %v154
              $region37: #{hccf_forward.4} parent=31 // loop_footer
                %s121 = sadd.s32 1, %s117
              $region38: #{hccf_forward.4} parent=31 // loop_footer_branch
                %116 = sbr.rel target = $region34
              $region39: #{hccf_forward.4} parent=31 // loop_exit
                _
            $region32: #{hccf_forward.4} parent=23 // pred_fallthru
              _
          $region24: #{hccf_forward.4} parent=19 // pred_fallthru
            _
          %207 = vnop
        $region20: #{hccf_forward.4} parent=15 // pred_fallthru
          _
        // Predicated region
        $region58: #{hccf_forward.4} parent=15 // pred_check
          %p208 = pneg %p54
        $region59: #{hccf_forward.4} parent=15 // pred_check_branch
          %210 = sbr.rel (%p208) target = $region61
        $region60: #{hccf_forward.4} parent=15 // pred_region
          %s211 = smul.u32 16, %s8
          %p212 = scmp.lt.s32.totalorder %s211, 47
          %s213 = scalar_select %p212, %s211, 47
          %s214 = smul.addr %s213, 4
          %s215 = scalar_lea.vmem %s1, %s214
          %s216 = smul.u32 16, %s8
        $region61: #{hccf_forward.4} parent=15 // pred_fallthru
          _
      $region16: #{hccf_forward.4} parent=5 // pred_fallthru
        _
      %p217 = scmp.le.s32.totalorder 1, %s8
      %p218 = scmp.lt.s32.totalorder %s8, 4
      %p219 = pnand %p217, %p218
      %p220 = pneg %p219
      // Predicated region
      $region62: #{hccf_forward.4} parent=5 // pred_check
        _
      $region63: #{hccf_forward.4} parent=5 // pred_check_branch
        %222 = sbr.rel (%p219) target = $region65
      $region64: #{hccf_forward.4} parent=5 // pred_region
        %s223 = ssub.s32 %s8, 1
        %s224 = sand.u32 %s21, 1
        %s225 = sand.u32 %s21, 1
        %s226 = smul.addr %s225, 64
        %s227 = scalar_lea.vmem [#allocation3], %s226
        // Predicated region
        $region66: #{hccf_forward.4} parent=64 // pred_check
          %p228 = pneg %p34
        $region67: #{hccf_forward.4} parent=64 // pred_check_branch
          %230 = sbr.rel (%p228) target = $region69
        $region68: #{hccf_forward.4} parent=64 // pred_region
          _
        $region69: #{hccf_forward.4} parent=64 // pred_fallthru
          _
        %s231 = sand.u32 %s21, 1
        %s232 = sand.u32 %s21, 1
        %s233 = smul.addr %s232, 64
        %s234 = scalar_lea.vmem [#allocation3], %s233
        %p235 = pneg %p34
        %p236 = pneg %p31
        %s237 = smul.u32 16, %s13
        %p238 = scmp.lt.s32.totalorder %s237, 47
        %s239 = scalar_select %p238, %s237, 47
        %s240 = smul.addr %s239, 4
        %s241 = scalar_lea.vmem %s1, %s240
        %p242 = pneg %p60
        %p243 = pneg %p57
        %p244 = pneg %p81
        %p245 = pneg %p78
        %s246 = smul.u32 16, %s13
        %p247 = scmp.lt.s32.totalorder %s246, 47
        %s248 = scalar_select %p247, %s246, 47
        %s249 = smul.addr %s248, 4
        %s250 = scalar_lea.vmem %s1, %s249
        %s251 = smul.u32 16, %s13
        %p253 = scmp.eq.s32.totalorder %s13, 0
        // Predicated region
        $region70: #{hccf_forward.4} parent=64 // pred_check
          %p254 = pneg %p253
        $region71: #{hccf_forward.4} parent=64 // pred_check_branch
          %256 = sbr.rel (%p254) target = $region73
        $region72: #{hccf_forward.4} parent=64 // pred_region
          %257 = vst [vmem:[#allocation2] sm:$0xff] 0.0
          %258 = vst [vmem:[#allocation2 + $0x8] sm:$0xff] 0.0
          %259 = vst [vmem:[#allocation2 + $0x10] sm:$0xff] 0.0
          %260 = vst [vmem:[#allocation2 + $0x18] sm:$0xff] 0.0
          %261 = vst [vmem:[#allocation2 + $0x20] sm:$0xff] 0.0
          %262 = vst [vmem:[#allocation2 + $0x28] sm:$0xff] 0.0
          %263 = vst [vmem:[#allocation2 + $0x30] sm:$0xff] 0.0
          %264 = vst [vmem:[#allocation2 + $0x38] sm:$0xff] 0.0
          %265 = vst [vmem:[#allocation2 + $0x40] sm:$0xff] 0.0
          %266 = vst [vmem:[#allocation2 + $0x48] sm:$0xff] 0.0
          %267 = vst [vmem:[#allocation2 + $0x50] sm:$0xff] 0.0
          %268 = vst [vmem:[#allocation2 + $0x58] sm:$0xff] 0.0
          %269 = vst [vmem:[#allocation2 + $0x60] sm:$0xff] 0.0
          %270 = vst [vmem:[#allocation2 + $0x68] sm:$0xff] 0.0
          %271 = vst [vmem:[#allocation2 + $0x70] sm:$0xff] 0.0
          %272 = vst [vmem:[#allocation2 + $0x78] sm:$0xff] 0.0
        $region73: #{hccf_forward.4} parent=64 // pred_fallthru
          _
        %v273 = vld [vmem:[#allocation2] sm:$0xff]
        %v274 = vld [vmem:[#allocation2 + $0x8] sm:$0xff]
        %v275 = vld [vmem:[#allocation2 + $0x10] sm:$0xff]
        %v276 = vld [vmem:[#allocation2 + $0x18] sm:$0xff]
        %v277 = vld [vmem:[#allocation2 + $0x20] sm:$0xff]
        %v278 = vld [vmem:[#allocation2 + $0x28] sm:$0xff]
        %v279 = vld [vmem:[#allocation2 + $0x30] sm:$0xff]
        %v280 = vld [vmem:[#allocation2 + $0x38] sm:$0xff]
        %v281 = vld [vmem:[#allocation2 + $0x40] sm:$0xff]
        %v282 = vld [vmem:[#allocation2 + $0x48] sm:$0xff]
        %v283 = vld [vmem:[#allocation2 + $0x50] sm:$0xff]
        %v284 = vld [vmem:[#allocation2 + $0x58] sm:$0xff]
        %v285 = vld [vmem:[#allocation2 + $0x60] sm:$0xff]
        %v286 = vld [vmem:[#allocation2 + $0x68] sm:$0xff]
        %v287 = vld [vmem:[#allocation2 + $0x70] sm:$0xff]
        %v288 = vld [vmem:[#allocation2 + $0x78] sm:$0xff]
        %v289 = vld [vmem:[%s227] sm:$0xf]
        %v290 = vld [vmem:[%s227 + $0x4] sm:$0xf]
        %v291 = vld [vmem:[%s227 + $0x8] sm:$0xf]
        %v292 = vld [vmem:[%s227 + $0xc] sm:$0xf]
        %v293 = vld [vmem:[%s227 + $0x10] sm:$0xf]
        %v294 = vld [vmem:[%s227 + $0x14] sm:$0xf]
        %v295 = vld [vmem:[%s227 + $0x18] sm:$0xf]
        %v296 = vld [vmem:[%s227 + $0x1c] sm:$0xf]
        %v297 = vld [vmem:[%s227 + $0x20] sm:$0xf]
        %v298 = vld [vmem:[%s227 + $0x24] sm:$0xf]
        %v299 = vld [vmem:[%s227 + $0x28] sm:$0xf]
        %v300 = vld [vmem:[%s227 + $0x2c] sm:$0xf]
        %v301 = vld [vmem:[%s227 + $0x30] sm:$0xf]
        %v302 = vld [vmem:[%s227 + $0x34] sm:$0xf]
        %v303 = vld [vmem:[%s227 + $0x38] sm:$0xf]
        %v304 = vld [vmem:[%s227 + $0x3c] sm:$0xf]
        %v305 = vld [vmem:[%s250] sm:$0xf]
        %v306 = vld [vmem:[%s250 + $0x4] sm:$0xf]
        %v307 = vld [vmem:[%s250 + $0x8] sm:$0xf]
        %v308 = vld [vmem:[%s250 + $0xc] sm:$0xf]
        %v309 = vld [vmem:[%s250 + $0x10] sm:$0xf]
        %v310 = vld [vmem:[%s250 + $0x14] sm:$0xf]
        %v311 = vld [vmem:[%s250 + $0x18] sm:$0xf]
        %v312 = vld [vmem:[%s250 + $0x1c] sm:$0xf]
        %v313 = vld [vmem:[%s250 + $0x20] sm:$0xf]
        %v314 = vld [vmem:[%s250 + $0x24] sm:$0xf]
        %v315 = vld [vmem:[%s250 + $0x28] sm:$0xf]
        %v316 = vld [vmem:[%s250 + $0x2c] sm:$0xf]
        %v317 = vld [vmem:[%s250 + $0x30] sm:$0xf]
        %v318 = vld [vmem:[%s250 + $0x34] sm:$0xf]
        %v319 = vld [vmem:[%s250 + $0x38] sm:$0xf]
        %v320 = vld [vmem:[%s250 + $0x3c] sm:$0xf]
        %v337 = vunpack.c.l.b16 %v289
        %v338 = vunpack.c.l.b16 %v290
        %v339 = vunpack.c.l.b16 %v291
        %v340 = vunpack.c.l.b16 %v292
        %v341 = vunpack.c.l.b16 %v293
        %v342 = vunpack.c.l.b16 %v294
        %v343 = vunpack.c.l.b16 %v295
        %v344 = vunpack.c.l.b16 %v296
        %v345 = vunpack.c.l.b16 %v297
        %v346 = vunpack.c.l.b16 %v298
        %v347 = vunpack.c.l.b16 %v299
        %v348 = vunpack.c.l.b16 %v300
        %v349 = vunpack.c.l.b16 %v301
        %v350 = vunpack.c.l.b16 %v302
        %v351 = vunpack.c.l.b16 %v303
        %v352 = vunpack.c.l.b16 %v304
        %v353 = vpack.c.b16 %v338, %v337
        %v354 = vpack.c.b16 %v340, %v339
        %v355 = vpack.c.b16 %v342, %v341
        %v356 = vpack.c.b16 %v344, %v343
        %v357 = vpack.c.b16 %v346, %v345
        %v358 = vpack.c.b16 %v348, %v347
        %v359 = vpack.c.b16 %v350, %v349
        %v360 = vpack.c.b16 %v352, %v351
        %v385 = vunpack.c.l.b16 %v305
        %v386 = vunpack.c.l.b16 %v306
        %v387 = vunpack.c.l.b16 %v307
        %v388 = vunpack.c.l.b16 %v308
        %v389 = vunpack.c.l.b16 %v309
        %v390 = vunpack.c.l.b16 %v310
        %v391 = vunpack.c.l.b16 %v311
        %v392 = vunpack.c.l.b16 %v312
        %v393 = vunpack.c.l.b16 %v313
        %v394 = vunpack.c.l.b16 %v314
        %v395 = vunpack.c.l.b16 %v315
        %v396 = vunpack.c.l.b16 %v316
        %v397 = vunpack.c.l.b16 %v317
        %v398 = vunpack.c.l.b16 %v318
        %v399 = vunpack.c.l.b16 %v319
        %v400 = vunpack.c.l.b16 %v320
        %v401 = vpack.c.b16 %v386, %v385
        %v402 = vpack.c.b16 %v388, %v387
        %v403 = vpack.c.b16 %v390, %v389
        %v404 = vpack.c.b16 %v392, %v391
        %v405 = vpack.c.b16 %v394, %v393
        %v406 = vpack.c.b16 %v396, %v395
        %v407 = vpack.c.b16 %v398, %v397
        %v408 = vpack.c.b16 %v400, %v399
        %417 = vmatprep.subr.bf16.mxu0 0
        %418 = vmatpush1.bf16.msra.mxu0 %v401
        %419 = vmatprep.subr.bf16.mxu0 0
        %420 = vmatpush1.bf16.msra.mxu0 %v402
        %421 = vmatprep.subr.bf16.mxu0 0
        %422 = vmatpush1.bf16.msra.mxu0 %v403
        %423 = vmatprep.subr.bf16.mxu0 0
        %424 = vmatpush1.bf16.msra.mxu0 %v404
        %425 = vmatprep.subr.bf16.mxu0 0
        %426 = vmatpush1.bf16.msra.mxu0 %v405
        %427 = vmatprep.subr.bf16.mxu0 0
        %428 = vmatpush1.bf16.msra.mxu0 %v406
        %429 = vmatprep.subr.bf16.mxu0 0
        %430 = vmatpush1.bf16.msra.mxu0 %v407
        %431 = vmatprep.subr.bf16.mxu0 0
        %432 = vmatpush1.bf16.msra.mxu0 %v408
        %433 = vmatprep.subr.bf16.mxu0 0
        %434 = vmatpush1.bf16.msra.mxu0 0
        %435 = vmatprep.subr.bf16.mxu0 0
        %436 = vmatpush1.bf16.msra.mxu0 0
        %437 = vmatprep.subr.bf16.mxu0 0
        %438 = vmatpush1.bf16.msra.mxu0 0
        %439 = vmatprep.subr.bf16.mxu0 0
        %440 = vmatpush1.bf16.msra.mxu0 0
        %441 = vmatprep.subr.bf16.mxu0 0
        %442 = vmatpush1.bf16.msra.mxu0 0
        %443 = vmatprep.subr.bf16.mxu0 0
        %444 = vmatpush1.bf16.msra.mxu0 0
        %445 = vmatprep.subr.bf16.mxu0 0
        %446 = vmatpush1.bf16.msra.mxu0 0
        %447 = vmatprep.subr.bf16.mxu0 0
        %448 = vmatpush1.bf16.msra.mxu0 0
        %449 = vmatprep.mubr.bf16.mxu0 0
        %450 = vmatmul.mubr.bf16.gmra.mrb[0].mxu0 %v353
        %v451 = vpop.f32.mrb[0].mxu0
        %v452 = vadd.f32 0.0, %v451
        %v453 = vpop.f32.mrb[0].mxu0
        %v454 = vpop.f32.mrb[0].mxu0
        %v455 = vadd.f32 0.0, %v454
        %v456 = vpop.f32.mrb[0].mxu0
        %457 = vmatprep.mubr.bf16.mxu0 0
        %458 = vmatmul.mubr.bf16.gmra.mrb[0].mxu0 %v354
        %v459 = vpop.f32.mrb[0].mxu0
        %v460 = vadd.f32 0.0, %v459
        %v461 = vpop.f32.mrb[0].mxu0
        %v462 = vpop.f32.mrb[0].mxu0
        %v463 = vadd.f32 0.0, %v462
        %v464 = vpop.f32.mrb[0].mxu0
        %465 = vmatprep.mubr.bf16.mxu0 0
        %466 = vmatmul.mubr.bf16.gmra.mrb[0].mxu0 %v355
        %v467 = vpop.f32.mrb[0].mxu0
        %v468 = vadd.f32 0.0, %v467
        %v469 = vpop.f32.mrb[0].mxu0
        %v470 = vpop.f32.mrb[0].mxu0
        %v471 = vadd.f32 0.0, %v470
        %v472 = vpop.f32.mrb[0].mxu0
        %473 = vmatprep.mubr.bf16.mxu0 0
        %474 = vmatmul.mubr.bf16.gmra.mrb[0].mxu0 %v356
        %v475 = vpop.f32.mrb[0].mxu0
        %v476 = vadd.f32 0.0, %v475
        %v477 = vpop.f32.mrb[0].mxu0
        %v478 = vpop.f32.mrb[0].mxu0
        %v479 = vadd.f32 0.0, %v478
        %v480 = vpop.f32.mrb[0].mxu0
        %481 = vmatprep.mubr.bf16.mxu0 0
        %482 = vmatmul.mubr.bf16.gmra.mrb[0].mxu0 %v357
        %v483 = vpop.f32.mrb[0].mxu0
        %v484 = vadd.f32 0.0, %v483
        %v485 = vpop.f32.mrb[0].mxu0
        %v486 = vpop.f32.mrb[0].mxu0
        %v487 = vadd.f32 0.0, %v486
        %v488 = vpop.f32.mrb[0].mxu0
        %489 = vmatprep.mubr.bf16.mxu0 0
        %490 = vmatmul.mubr.bf16.gmra.mrb[0].mxu0 %v358
        %v491 = vpop.f32.mrb[0].mxu0
        %v492 = vadd.f32 0.0, %v491
        %v493 = vpop.f32.mrb[0].mxu0
        %v494 = vpop.f32.mrb[0].mxu0
        %v495 = vadd.f32 0.0, %v494
        %v496 = vpop.f32.mrb[0].mxu0
        %497 = vmatprep.mubr.bf16.mxu0 0
        %498 = vmatmul.mubr.bf16.gmra.mrb[0].mxu0 %v359
        %v499 = vpop.f32.mrb[0].mxu0
        %v500 = vadd.f32 0.0, %v499
        %v501 = vpop.f32.mrb[0].mxu0
        %v502 = vpop.f32.mrb[0].mxu0
        %v503 = vadd.f32 0.0, %v502
        %v504 = vpop.f32.mrb[0].mxu0
        %505 = vmatprep.mubr.bf16.mxu0 0
        %506 = vmatmul.mubr.bf16.gmra.mrb[0].mxu0 %v360
        %v507 = vpop.f32.mrb[0].mxu0
        %v508 = vadd.f32 0.0, %v507
        %v509 = vpop.f32.mrb[0].mxu0
        %v510 = vpop.f32.mrb[0].mxu0
        %v511 = vadd.f32 0.0, %v510
        %v512 = vpop.f32.mrb[0].mxu0
        %513 = vdwg.mxu0
        %v514 = vadd.f32 %v273, %v452
        %v515 = vadd.f32 %v274, %v455
        %v516 = vadd.f32 %v275, %v460
        %v517 = vadd.f32 %v276, %v463
        %v518 = vadd.f32 %v277, %v468
        %v519 = vadd.f32 %v278, %v471
        %v520 = vadd.f32 %v279, %v476
        %v521 = vadd.f32 %v280, %v479
        %v522 = vadd.f32 %v281, %v484
        %v523 = vadd.f32 %v282, %v487
        %v524 = vadd.f32 %v283, %v492
        %v525 = vadd.f32 %v284, %v495
        %v526 = vadd.f32 %v285, %v500
        %v527 = vadd.f32 %v286, %v503
        %v528 = vadd.f32 %v287, %v508
        %v529 = vadd.f32 %v288, %v511
        %530 = vst [vmem:[#allocation2] sm:$0xff] %v514
        %531 = vst [vmem:[#allocation2 + $0x8] sm:$0xff] %v515
        %532 = vst [vmem:[#allocation2 + $0x10] sm:$0xff] %v516
        %533 = vst [vmem:[#allocation2 + $0x18] sm:$0xff] %v517
        %534 = vst [vmem:[#allocation2 + $0x20] sm:$0xff] %v518
        %535 = vst [vmem:[#allocation2 + $0x28] sm:$0xff] %v519
        %536 = vst [vmem:[#allocation2 + $0x30] sm:$0xff] %v520
        %537 = vst [vmem:[#allocation2 + $0x38] sm:$0xff] %v521
        %538 = vst [vmem:[#allocation2 + $0x40] sm:$0xff] %v522
        %539 = vst [vmem:[#allocation2 + $0x48] sm:$0xff] %v523
        %540 = vst [vmem:[#allocation2 + $0x50] sm:$0xff] %v524
        %541 = vst [vmem:[#allocation2 + $0x58] sm:$0xff] %v525
        %542 = vst [vmem:[#allocation2 + $0x60] sm:$0xff] %v526
        %543 = vst [vmem:[#allocation2 + $0x68] sm:$0xff] %v527
        %544 = vst [vmem:[#allocation2 + $0x70] sm:$0xff] %v528
        %545 = vst [vmem:[#allocation2 + $0x78] sm:$0xff] %v529
        %p546 = scmp.eq.s32.totalorder %s13, 2
        // Predicated region
        $region74: #{hccf_forward.4} parent=64 // pred_check
          %p547 = pneg %p546
        $region75: #{hccf_forward.4} parent=64 // pred_check_branch
          %549 = sbr.rel (%p547) target = $region77
        $region76: #{hccf_forward.4} parent=64 // pred_region
          %v550 = vld [vmem:[#allocation2] sm:$0xff]
          %v551 = vld [vmem:[#allocation2 + $0x8] sm:$0xff]
          %v552 = vld [vmem:[#allocation2 + $0x10] sm:$0xff]
          %v553 = vld [vmem:[#allocation2 + $0x18] sm:$0xff]
          %v554 = vld [vmem:[#allocation2 + $0x20] sm:$0xff]
          %v555 = vld [vmem:[#allocation2 + $0x28] sm:$0xff]
          %v556 = vld [vmem:[#allocation2 + $0x30] sm:$0xff]
          %v557 = vld [vmem:[#allocation2 + $0x38] sm:$0xff]
          %v558 = vld [vmem:[#allocation2 + $0x40] sm:$0xff]
          %v559 = vld [vmem:[#allocation2 + $0x48] sm:$0xff]
          %v560 = vld [vmem:[#allocation2 + $0x50] sm:$0xff]
          %v561 = vld [vmem:[#allocation2 + $0x58] sm:$0xff]
          %v562 = vld [vmem:[#allocation2 + $0x60] sm:$0xff]
          %v563 = vld [vmem:[#allocation2 + $0x68] sm:$0xff]
          %v564 = vld [vmem:[#allocation2 + $0x70] sm:$0xff]
          %v565 = vld [vmem:[#allocation2 + $0x78] sm:$0xff]
          %v566 = vpack.c.bf16 %v551, %v550
          %v567 = vpack.c.bf16 %v553, %v552
          %v568 = vpack.c.bf16 %v555, %v554
          %v569 = vpack.c.bf16 %v557, %v556
          %v570 = vpack.c.bf16 %v559, %v558
          %v571 = vpack.c.bf16 %v561, %v560
          %v572 = vpack.c.bf16 %v563, %v562
          %v573 = vpack.c.bf16 %v565, %v564
          %v582 = vunpack.c.l.b16 %v566
          %v583 = vunpack.c.h.b16 %v566
          %v584 = vunpack.c.l.b16 %v567
          %v585 = vunpack.c.h.b16 %v567
          %v586 = vunpack.c.l.b16 %v568
          %v587 = vunpack.c.h.b16 %v568
          %v588 = vunpack.c.l.b16 %v569
          %v589 = vunpack.c.h.b16 %v569
          %v590 = vunpack.c.l.b16 %v570
          %v591 = vunpack.c.h.b16 %v570
          %v592 = vunpack.c.l.b16 %v571
          %v593 = vunpack.c.h.b16 %v571
          %v594 = vunpack.c.l.b16 %v572
          %v595 = vunpack.c.h.b16 %v572
          %v596 = vunpack.c.l.b16 %v573
          %v597 = vunpack.c.h.b16 %v573
          %v598 = vpack.c.b16 %v582, %v582
          %v599 = vpack.c.b16 %v583, %v583
          %v600 = vpack.c.b16 %v584, %v584
          %v601 = vpack.c.b16 %v585, %v585
          %v602 = vpack.c.b16 %v586, %v586
          %v603 = vpack.c.b16 %v587, %v587
          %v604 = vpack.c.b16 %v588, %v588
          %v605 = vpack.c.b16 %v589, %v589
          %v606 = vpack.c.b16 %v590, %v590
          %v607 = vpack.c.b16 %v591, %v591
          %v608 = vpack.c.b16 %v592, %v592
          %v609 = vpack.c.b16 %v593, %v593
          %v610 = vpack.c.b16 %v594, %v594
          %v611 = vpack.c.b16 %v595, %v595
          %v612 = vpack.c.b16 %v596, %v596
          %v613 = vpack.c.b16 %v597, %v597
          %630 = vst [vmem:[%s2] sm:$0xf] %v598
          %631 = vst [vmem:[%s2 + $0x4] sm:$0xf] %v599
          %632 = vst [vmem:[%s2 + $0x8] sm:$0xf] %v600
          %633 = vst [vmem:[%s2 + $0xc] sm:$0xf] %v601
          %634 = vst [vmem:[%s2 + $0x10] sm:$0xf] %v602
          %635 = vst [vmem:[%s2 + $0x14] sm:$0xf] %v603
          %636 = vst [vmem:[%s2 + $0x18] sm:$0xf] %v604
          %637 = vst [vmem:[%s2 + $0x1c] sm:$0xf] %v605
          %638 = vst [vmem:[%s2 + $0x20] sm:$0xf] %v606
          %639 = vst [vmem:[%s2 + $0x24] sm:$0xf] %v607
          %640 = vst [vmem:[%s2 + $0x28] sm:$0xf] %v608
          %641 = vst [vmem:[%s2 + $0x2c] sm:$0xf] %v609
          %642 = vst [vmem:[%s2 + $0x30] sm:$0xf] %v610
          %643 = vst [vmem:[%s2 + $0x34] sm:$0xf] %v611
          %644 = vst [vmem:[%s2 + $0x38] sm:$0xf] %v612
          %645 = vst [vmem:[%s2 + $0x3c] sm:$0xf] %v613
        $region77: #{hccf_forward.4} parent=64 // pred_fallthru
          _
        // Predicated region
        $region78: #{hccf_forward.4} parent=64 // pred_check
          %p646 = pneg %p78
        $region79: #{hccf_forward.4} parent=64 // pred_check_branch
          %648 = sbr.rel (%p646) target = $region81
        $region80: #{hccf_forward.4} parent=64 // pred_region
          _
        $region81: #{hccf_forward.4} parent=64 // pred_fallthru
          _
        // Predicated region
        $region82: #{hccf_forward.4} parent=64 // pred_check
          %p649 = pneg %p78
        $region83: #{hccf_forward.4} parent=64 // pred_check_branch
          %651 = sbr.rel (%p649) target = $region85
        $region84: #{hccf_forward.4} parent=64 // pred_region
          _
        $region85: #{hccf_forward.4} parent=64 // pred_fallthru
          _
      $region65: #{hccf_forward.4} parent=5 // pred_fallthru
        _
      %p652 = scmp.le.s32.totalorder 2, %s8
      // Predicated region
      $region86: #{hccf_forward.4} parent=5 // pred_check
        %p653 = pneg %p652
      $region87: #{hccf_forward.4} parent=5 // pred_check_branch
        %655 = sbr.rel (%p653) target = $region89
      $region88: #{hccf_forward.4} parent=5 // pred_region
        %s656 = ssub.s32 %s8, 2
      $region89: #{hccf_forward.4} parent=5 // pred_fallthru
        _
    $region6: #{hccf_forward.4} parent=1 // loop_footer
      %s12 = sadd.s32 1, %s8
    $region7: #{hccf_forward.4} parent=1 // loop_footer_branch
      %7 = sbr.rel target = $region3
    $region8: #{hccf_forward.4} parent=1 // loop_exit
      _

// kernel: hccf_forward.5
$region0: #{hccf_forward.5}
  #allocation0 [shape = 'u32[]', space=smem, size = 0x4, offset = 0x4, fixed_abs, tag = 'smem constant byte address 0x4 - core index']
  #allocation1 [shape = 'u32[144,128]{1,0:T(1,128)}', space=vmem, size = 0x12000, scoped, tag = 'internal scratch']
  #allocation2 [shape = 'f32[64,128]{1,0:T(8,128)}', space=vmem, size = 0x8000, scoped, tag = 'scratch operand']
  %s0 = inlined_call_operand.vmem [shape: bf16[384,384], index: 0, kind: input, shape index: {}]
  %s1 = inlined_call_operand.vmem [shape: bf16[384,128], index: 1, kind: input, shape index: {}]
  %s2 = inlined_call_operand.vmem [shape: bf16[384,128], index: 2, kind: input, shape index: {}]
  %s3 = inlined_call_operand.vmem [shape: bf16[128,128], index: 3, kind: input, shape index: {}]
  %s4 = inlined_call_operand.vmem [shape: f32[384,128], index: 4, kind: output, shape index: {0}]
  %s5 = inlined_call_operand.vmem [shape: f32[384,128], index: 5, kind: output, shape index: {1}]
  %6 = xla_tuple %s4, %s5
  %s7 = sld [smem:[#allocation0]]
  $region106: #{hccf_forward.5} parent=0
    _
  %s9 = ssub.s32 1, %s7
  %s10 = scalar_select 0, %s9, %s7
  $region1: #{hccf_forward.5} parent=0
    #allocation3 [shape = 'u8[32768]{0}', space=vmem, size = 0x8000, scoped, tag = 'input window, operand 0']
    loop: start=0, step=1, limit=20
    $region2: #{hccf_forward.5} parent=1 // loop_pre_header
      _
    $region3: #{hccf_forward.5} parent=1 // loop_header
      %s12 = sphi 0, %s16
      %p13 = scmp.ge.s32.totalorder %s12, 20
      %s19 = sphi 0, %s31
      %s20 = sphi 0, %s27
      %s21 = sphi 0, %s19
      %s22 = sphi 0, %s20
      %s23 = sphi 0, %s21
      %s24 = sphi 0, %s22
      %s36 = sphi 0, %s38
      %s39 = sphi 0, %s36
      %s40 = sphi 0, %s39
      %s56 = sphi 0, %s40
      %s62 = sphi 0, %s64
      %s65 = sphi 0, %s62
      %s66 = sphi 0, %s65
      %s82 = sphi 0, %s66
      %s88 = sphi 0, %s90
      %s91 = sphi 0, %s88
      %s92 = sphi 0, %s91
      %s108 = sphi 0, %s92
      %s112 = sphi 0, %s112
      %s114 = sphi 0, %s112
      %s115 = sphi 0, %s114
      %s129 = sphi 0, %s115
      %s135 = sphi 0, %s137
      %s138 = sphi 0, %s135
      %s139 = sphi 0, %s138
      %s155 = sphi 0, %s139
      %s161 = sphi 0, %s163
      %s164 = sphi 0, %s161
      %s165 = sphi 0, %s164
      %s181 = sphi 0, %s165
    $region4: #{hccf_forward.5} parent=1 // loop_header_branch
      %15 = sbr.rel (%p13) target = $region8
    $region5: #{hccf_forward.5} parent=1 // loop_body
      %s17 = ssub.s32 %s12, 1
      %s18 = ssub.s32 %s12, 2
      %s25 = sadd.s32 1, %s20
      %p26 = scmp.ge.s32.totalorder %s25, 3
      %s27 = scalar_select %p26, 0, %s25
      %s28 = sadd.s32 1, %s19
      %s29 = scalar_select %p26, %s28, %s19
      %p30 = scmp.ge.s32.totalorder %s29, 6
      %s31 = scalar_select %p30, 0, %s29
      %s32 = ssub.s32 %s19, %s31
      %s33 = ssub.s32 %s20, %s27
      %s34 = sor.u32 %s32, %s33
      %p35 = scmp.eq.s32.totalorder %s34, 0
      %s37 = sadd.s32 %s36, 1
      %s38 = scalar_select %p35, %s36, %s37
      %p41 = pneg %p35
      %p42 = scmp.eq.s32.totalorder %s12, 17
      %p43 = por %p41, %p42
      %p44 = scmp.ne.s32.totalorder %s36, %s39
      %p45 = scmp.eq.s32.totalorder %s12, 0
      %p46 = por %p44, %p45
      %p47 = scmp.ne.s32.totalorder %s36, %s39
      %p48 = scmp.eq.s32.totalorder %s17, 17
      %p49 = por %p47, %p48
      %p50 = scmp.ne.s32.totalorder %s39, %s40
      %p51 = scmp.eq.s32.totalorder %s17, 0
      %p52 = por %p50, %p51
      %p53 = scmp.ne.s32.totalorder %s39, %s40
      %p54 = scmp.eq.s32.totalorder %s18, 17
      %p55 = por %p53, %p54
      %p57 = scmp.ne.s32.totalorder %s40, %s56
      %p58 = scmp.eq.s32.totalorder %s18, 0
      %p59 = por %p57, %p58
      %s60 = ssub.s32 %s20, %s27
      %p61 = scmp.eq.s32.totalorder %s60, 0
      %s63 = sadd.s32 %s62, 1
      %s64 = scalar_select %p61, %s62, %s63
      %p67 = pneg %p61
      %p68 = scmp.eq.s32.totalorder %s12, 17
      %p69 = por %p67, %p68
      %p70 = scmp.ne.s32.totalorder %s62, %s65
      %p71 = scmp.eq.s32.totalorder %s12, 0
      %p72 = por %p70, %p71
      %p73 = scmp.ne.s32.totalorder %s62, %s65
      %p74 = scmp.eq.s32.totalorder %s17, 17
      %p75 = por %p73, %p74
      %p76 = scmp.ne.s32.totalorder %s65, %s66
      %p77 = scmp.eq.s32.totalorder %s17, 0
      %p78 = por %p76, %p77
      %p79 = scmp.ne.s32.totalorder %s65, %s66
      %p80 = scmp.eq.s32.totalorder %s18, 17
      %p81 = por %p79, %p80
      %p83 = scmp.ne.s32.totalorder %s66, %s82
      %p84 = scmp.eq.s32.totalorder %s18, 0
      %p85 = por %p83, %p84
      %s86 = ssub.s32 %s19, %s31
      %p87 = scmp.eq.s32.totalorder %s86, 0
      %s89 = sadd.s32 %s88, 1
      %s90 = scalar_select %p87, %s88, %s89
      %p93 = pneg %p87
      %p94 = scmp.eq.s32.totalorder %s12, 17
      %p95 = por %p93, %p94
      %p96 = scmp.ne.s32.totalorder %s88, %s91
      %p97 = scmp.eq.s32.totalorder %s12, 0
      %p98 = por %p96, %p97
      %p99 = scmp.ne.s32.totalorder %s88, %s91
      %p100 = scmp.eq.s32.totalorder %s17, 17
      %p101 = por %p99, %p100
      %p102 = scmp.ne.s32.totalorder %s91, %s92
      %p103 = scmp.eq.s32.totalorder %s17, 0
      %p104 = por %p102, %p103
      %p105 = scmp.ne.s32.totalorder %s91, %s92
      %p106 = scmp.eq.s32.totalorder %s18, 17
      %p107 = por %p105, %p106
      %p109 = scmp.ne.s32.totalorder %s92, %s108
      %p110 = scmp.eq.s32.totalorder %s18, 0
      %p111 = por %p109, %p110
      %s113 = sadd.s32 %s112, 1
      %p116 = scmp.eq.s32.totalorder %s12, 17
      %p117 = scmp.ne.s32.totalorder %s112, %s114
      %p118 = scmp.eq.s32.totalorder %s12, 0
      %p119 = por %p117, %p118
      %p120 = scmp.ne.s32.totalorder %s112, %s114
      %p121 = scmp.eq.s32.totalorder %s17, 17
      %p122 = por %p120, %p121
      %p123 = scmp.ne.s32.totalorder %s114, %s115
      %p124 = scmp.eq.s32.totalorder %s17, 0
      %p125 = por %p123, %p124
      %p126 = scmp.ne.s32.totalorder %s114, %s115
      %p127 = scmp.eq.s32.totalorder %s18, 17
      %p128 = por %p126, %p127
      %p130 = scmp.ne.s32.totalorder %s115, %s129
      %p131 = scmp.eq.s32.totalorder %s18, 0
      %p132 = por %p130, %p131
      %s133 = ssub.s32 %s19, %s31
      %p134 = scmp.eq.s32.totalorder %s133, 0
      %s136 = sadd.s32 %s135, 1
      %s137 = scalar_select %p134, %s135, %s136
      %p140 = pneg %p134
      %p141 = scmp.eq.s32.totalorder %s12, 17
      %p142 = por %p140, %p141
      %p143 = scmp.ne.s32.totalorder %s135, %s138
      %p144 = scmp.eq.s32.totalorder %s12, 0
      %p145 = por %p143, %p144
      %p146 = scmp.ne.s32.totalorder %s135, %s138
      %p147 = scmp.eq.s32.totalorder %s17, 17
      %p148 = por %p146, %p147
      %p149 = scmp.ne.s32.totalorder %s138, %s139
      %p150 = scmp.eq.s32.totalorder %s17, 0
      %p151 = por %p149, %p150
      %p152 = scmp.ne.s32.totalorder %s138, %s139
      %p153 = scmp.eq.s32.totalorder %s18, 17
      %p154 = por %p152, %p153
      %p156 = scmp.ne.s32.totalorder %s139, %s155
      %p157 = scmp.eq.s32.totalorder %s18, 0
      %p158 = por %p156, %p157
      %s159 = ssub.s32 %s19, %s31
      %p160 = scmp.eq.s32.totalorder %s159, 0
      %s162 = sadd.s32 %s161, 1
      %s163 = scalar_select %p160, %s161, %s162
      %p166 = pneg %p160
      %p167 = scmp.eq.s32.totalorder %s12, 17
      %p168 = por %p166, %p167
      %p169 = scmp.ne.s32.totalorder %s161, %s164
      %p170 = scmp.eq.s32.totalorder %s12, 0
      %p171 = por %p169, %p170
      %p172 = scmp.ne.s32.totalorder %s161, %s164
      %p173 = scmp.eq.s32.totalorder %s17, 17
      %p174 = por %p172, %p173
      %p175 = scmp.ne.s32.totalorder %s164, %s165
      %p176 = scmp.eq.s32.totalorder %s17, 0
      %p177 = por %p175, %p176
      %p178 = scmp.ne.s32.totalorder %s164, %s165
      %p179 = scmp.eq.s32.totalorder %s18, 17
      %p180 = por %p178, %p179
      %p182 = scmp.ne.s32.totalorder %s165, %s181
      %p183 = scmp.eq.s32.totalorder %s18, 0
      %p184 = por %p182, %p183
      %p185 = scmp.le.s32.totalorder 1, %s12
      %p186 = scmp.lt.s32.totalorder %s12, 19
      %p187 = pnand %p185, %p186
      %p188 = pneg %p187
      // Predicated region
      $region9: #{hccf_forward.5} parent=5 // pred_check
        _
      $region10: #{hccf_forward.5} parent=5 // pred_check_branch
        %190 = sbr.rel (%p187) target = $region12
      $region11: #{hccf_forward.5} parent=5 // pred_region
        %s191 = ssub.s32 %s12, 1
        // Predicated region
        $region13: #{hccf_forward.5} parent=11 // pred_check
          %p192 = pneg %p125
        $region14: #{hccf_forward.5} parent=11 // pred_check_branch
          %194 = sbr.rel (%p192) target = $region16
        $region15: #{hccf_forward.5} parent=11 // pred_region
          _
        $region16: #{hccf_forward.5} parent=11 // pred_fallthru
          _
      $region12: #{hccf_forward.5} parent=5 // pred_fallthru
        _
      %p195 = scmp.lt.s32.totalorder %s12, 18
      // Predicated region
      $region17: #{hccf_forward.5} parent=5 // pred_check
        %p196 = pneg %p195
      $region18: #{hccf_forward.5} parent=5 // pred_check_branch
        %198 = sbr.rel (%p196) target = $region20
      $region19: #{hccf_forward.5} parent=5 // pred_region
        // Predicated region
        $region21: #{hccf_forward.5} parent=19 // pred_check
          %p199 = pneg %p46
        $region22: #{hccf_forward.5} parent=19 // pred_check_branch
          %201 = sbr.rel (%p199) target = $region24
        $region23: #{hccf_forward.5} parent=19 // pred_region
          %s202 = sand.u32 %s36, 1
          %s203 = sand.u32 %s36, 1
          %s204 = smul.addr %s203, 32
          %s205 = scalar_lea.vmem [#allocation3], %s204
          %s206 = smul.u32 8, %s19
          %s207 = smul.addr %s206, 3
          %s208 = sadd.s32 %s20, %s207
          %s209 = smul.addr %s208, 4
          %s210 = scalar_lea.vmem %s0, %s209
          // Predicated region
          $region25: #{hccf_forward.5} parent=23 // pred_check
            _
          $region26: #{hccf_forward.5} parent=23 // pred_check_branch
            %212 = sbr.rel (0) target = $region28
          $region27: #{hccf_forward.5} parent=23 // pred_region
            // Predicated region
            $region29: #{hccf_forward.5} parent=27 // pred_check
              _
            $region30: #{hccf_forward.5} parent=27 // pred_check_branch
              %214 = sbr.rel target = $region32
            $region31: #{hccf_forward.5} parent=27 // pred_region
              // Predicated region
              $region44: #{hccf_forward.5} parent=31 // pred_check
                _
              $region45: #{hccf_forward.5} parent=31 // pred_check_branch
                %243 = sbr.rel (0) target = $region47
              $region46: #{hccf_forward.5} parent=31 // pred_region
                loop: start=0, step=1, limit=1
                $region48: #{hccf_forward.5} parent=46 // loop_pre_header
                  _
                $region49: #{hccf_forward.5} parent=46 // loop_header
                  %s245 = sphi 0, %s249
                  %p246 = scmp.ge.s32.totalorder %s245, 1
                  %s250 = sphi %s210, %s210
                  %s251 = sphi %s205, %s205
                $region50: #{hccf_forward.5} parent=46 // loop_header_branch
                  %248 = sbr.rel (%p246) target = $region54
                $region51: #{hccf_forward.5} parent=46 // loop_body
                  _
                $region52: #{hccf_forward.5} parent=46 // loop_footer
                  %s249 = sadd.s32 1, %s245
                $region53: #{hccf_forward.5} parent=46 // loop_footer_branch
                  %244 = sbr.rel target = $region49
                $region54: #{hccf_forward.5} parent=46 // loop_exit
                  _
                loop: start=0, step=1, limit=1
                $region55: #{hccf_forward.5} parent=46 // loop_pre_header
                  _
                $region56: #{hccf_forward.5} parent=46 // loop_header
                  %s254 = sphi 0, %s258
                  %p255 = scmp.ge.s32.totalorder %s254, 1
                  %s259 = sphi %s210, %s210
                  %s260 = sphi %s205, %s205
                $region57: #{hccf_forward.5} parent=46 // loop_header_branch
                  %257 = sbr.rel (%p255) target = $region61
                $region58: #{hccf_forward.5} parent=46 // loop_body
                  %v261 = vld [vmem:[%s259] sm:$0xf]
                  %262 = vst [vmem:[%s260] sm:$0xf] %v261
                  %v263 = vld [vmem:[%s259 + $0xc] sm:$0xf]
                  %264 = vst [vmem:[%s260 + $0x4] sm:$0xf] %v263
                  %v265 = vld [vmem:[%s259 + $0x18] sm:$0xf]
                  %266 = vst [vmem:[%s260 + $0x8] sm:$0xf] %v265
                  %v267 = vld [vmem:[%s259 + $0x24] sm:$0xf]
                  %268 = vst [vmem:[%s260 + $0xc] sm:$0xf] %v267
                  %v269 = vld [vmem:[%s259 + $0x30] sm:$0xf]
                  %270 = vst [vmem:[%s260 + $0x10] sm:$0xf] %v269
                  %v271 = vld [vmem:[%s259 + $0x3c] sm:$0xf]
                  %272 = vst [vmem:[%s260 + $0x14] sm:$0xf] %v271
                  %v273 = vld [vmem:[%s259 + $0x48] sm:$0xf]
                  %274 = vst [vmem:[%s260 + $0x18] sm:$0xf] %v273
                  %v275 = vld [vmem:[%s259 + $0x54] sm:$0xf]
                  %276 = vst [vmem:[%s260 + $0x1c] sm:$0xf] %v275
                $region59: #{hccf_forward.5} parent=46 // loop_footer
                  %s258 = sadd.s32 1, %s254
                $region60: #{hccf_forward.5} parent=46 // loop_footer_branch
                  %253 = sbr.rel target = $region56
                $region61: #{hccf_forward.5} parent=46 // loop_exit
                  _
              $region47: #{hccf_forward.5} parent=31 // pred_fallthru
                _
            $region32: #{hccf_forward.5} parent=27 // pred_fallthru
              _
            // Predicated region
            $region33: #{hccf_forward.5} parent=27 // pred_check
              _
            $region34: #{hccf_forward.5} parent=27 // pred_check_branch
              %216 = sbr.rel (0) target = $region36
            $region35: #{hccf_forward.5} parent=27 // pred_region
              loop: start=0, step=1, limit=1
              $region37: #{hccf_forward.5} parent=35 // loop_pre_header
                _
              $region38: #{hccf_forward.5} parent=35 // loop_header
                %s219 = sphi 0, %s223
                %p220 = scmp.ge.s32.totalorder %s219, 1
                %s224 = sphi %s210, %s210
                %s225 = sphi %s205, %s205
              $region39: #{hccf_forward.5} parent=35 // loop_header_branch
                %222 = sbr.rel (%p220) target = $region43
              $region40: #{hccf_forward.5} parent=35 // loop_body
                %v226 = vld [vmem:[%s224] sm:$0xf]
                %227 = vst [vmem:[%s225] sm:$0xf] %v226
                %v228 = vld [vmem:[%s224 + $0xc] sm:$0xf]
                %229 = vst [vmem:[%s225 + $0x4] sm:$0xf] %v228
                %v230 = vld [vmem:[%s224 + $0x18] sm:$0xf]
                %231 = vst [vmem:[%s225 + $0x8] sm:$0xf] %v230
                %v232 = vld [vmem:[%s224 + $0x24] sm:$0xf]
                %233 = vst [vmem:[%s225 + $0xc] sm:$0xf] %v232
                %v234 = vld [vmem:[%s224 + $0x30] sm:$0xf]
                %235 = vst [vmem:[%s225 + $0x10] sm:$0xf] %v234
                %v236 = vld [vmem:[%s224 + $0x3c] sm:$0xf]
                %237 = vst [vmem:[%s225 + $0x14] sm:$0xf] %v236
                %v238 = vld [vmem:[%s224 + $0x48] sm:$0xf]
                %239 = vst [vmem:[%s225 + $0x18] sm:$0xf] %v238
                %v240 = vld [vmem:[%s224 + $0x54] sm:$0xf]
                %241 = vst [vmem:[%s225 + $0x1c] sm:$0xf] %v240
              $region41: #{hccf_forward.5} parent=35 // loop_footer
                %s223 = sadd.s32 1, %s219
              $region42: #{hccf_forward.5} parent=35 // loop_footer_branch
                %218 = sbr.rel target = $region38
              $region43: #{hccf_forward.5} parent=35 // loop_exit
                _
            $region36: #{hccf_forward.5} parent=27 // pred_fallthru
              _
          $region28: #{hccf_forward.5} parent=23 // pred_fallthru
            _
          %277 = vnop
        $region24: #{hccf_forward.5} parent=19 // pred_fallthru
          _
        // Predicated region
        $region62: #{hccf_forward.5} parent=19 // pred_check
          %p278 = pneg %p72
        $region63: #{hccf_forward.5} parent=19 // pred_check_branch
          %280 = sbr.rel (%p278) target = $region65
        $region64: #{hccf_forward.5} parent=19 // pred_region
          %s281 = smul.u32 16, %s20
          %p282 = scmp.lt.s32.totalorder %s281, 47
          %s283 = scalar_select %p282, %s281, 47
          %s284 = smul.addr %s283, 4
          %s285 = scalar_lea.vmem %s1, %s284
          %s286 = smul.u32 16, %s20
        $region65: #{hccf_forward.5} parent=19 // pred_fallthru
          _
        // Predicated region
        $region66: #{hccf_forward.5} parent=19 // pred_check
          %p287 = pneg %p98
        $region67: #{hccf_forward.5} parent=19 // pred_check_branch
          %289 = sbr.rel (%p287) target = $region69
        $region68: #{hccf_forward.5} parent=19 // pred_region
          %s290 = smul.u32 8, %s19
          %p291 = scmp.lt.s32.totalorder %s290, 47
          %s292 = scalar_select %p291, %s290, 47
          %s293 = smul.addr %s292, 4
          %s294 = scalar_lea.vmem %s2, %s293
          %s295 = smul.u32 8, %s19
        $region69: #{hccf_forward.5} parent=19 // pred_fallthru
          _
      $region20: #{hccf_forward.5} parent=5 // pred_fallthru
        _
      %p296 = scmp.le.s32.totalorder 1, %s12
      %p297 = scmp.lt.s32.totalorder %s12, 19
      %p298 = pnand %p296, %p297
      %p299 = pneg %p298
      // Predicated region
      $region70: #{hccf_forward.5} parent=5 // pred_check
        _
      $region71: #{hccf_forward.5} parent=5 // pred_check_branch
        %301 = sbr.rel (%p298) target = $region73
      $region72: #{hccf_forward.5} parent=5 // pred_region
        %s302 = ssub.s32 %s12, 1
        %s303 = sand.u32 %s39, 1
        %s304 = sand.u32 %s39, 1
        %s305 = smul.addr %s304, 32
        %s306 = scalar_lea.vmem [#allocation3], %s305
        // Predicated region
        $region74: #{hccf_forward.5} parent=72 // pred_check
          %p307 = pneg %p52
        $region75: #{hccf_forward.5} parent=72 // pred_check_branch
          %309 = sbr.rel (%p307) target = $region77
        $region76: #{hccf_forward.5} parent=72 // pred_region
          _
        $region77: #{hccf_forward.5} parent=72 // pred_fallthru
          _
        %s310 = sand.u32 %s39, 1
        %s311 = sand.u32 %s39, 1
        %s312 = smul.addr %s311, 32
        %s313 = scalar_lea.vmem [#allocation3], %s312
        %p314 = pneg %p52
        %p315 = pneg %p49
        %s316 = smul.u32 16, %s22
        %p317 = scmp.lt.s32.totalorder %s316, 47
        %s318 = scalar_select %p317, %s316, 47
        %s319 = smul.addr %s318, 4
        %s320 = scalar_lea.vmem %s1, %s319
        %p321 = pneg %p78
        %p322 = pneg %p75
        %s323 = smul.u32 8, %s21
        %p324 = scmp.lt.s32.totalorder %s323, 47
        %s325 = scalar_select %p324, %s323, 47
        %s326 = smul.addr %s325, 4
        %s327 = scalar_lea.vmem %s2, %s326
        %p328 = pneg %p104
        %p329 = pneg %p101
        %p330 = pneg %p125
        %p331 = pneg %p122
        %p332 = pneg %p151
        %p333 = pneg %p148
        %s334 = smul.u32 8, %s21
        %p335 = scmp.lt.s32.totalorder %s334, 47
        %s336 = scalar_select %p335, %s334, 47
        %s337 = smul.addr %s336, 8
        %s338 = scalar_lea.vmem %s4, %s337
        %p339 = pneg %p177
        %p340 = pneg %p174
        %s341 = smul.u32 8, %s21
        %p342 = scmp.lt.s32.totalorder %s341, 47
        %s343 = scalar_select %p342, %s341, 47
        %s344 = smul.addr %s343, 8
        %s345 = scalar_lea.vmem %s5, %s344
        %s346 = smul.u32 8, %s21
        %s347 = smul.u32 16, %s22
        %p348 = scmp.lt.s32.totalorder %s347, 47
        %s349 = scalar_select %p348, %s347, 47
        %s350 = smul.addr %s349, 4
        %s351 = scalar_lea.vmem %s1, %s350
        %s352 = smul.u32 16, %s22
        %s353 = smul.u32 8, %s21
        %p354 = scmp.lt.s32.totalorder %s353, 47
        %s355 = scalar_select %p354, %s353, 47
        %s356 = smul.addr %s355, 4
        %s357 = scalar_lea.vmem %s2, %s356
        %s358 = smul.u32 8, %s21
        %s359 = smul.u32 8, %s21
        %p360 = scmp.lt.s32.totalorder %s359, 47
        %s361 = scalar_select %p360, %s359, 47
        %s362 = smul.addr %s361, 8
        %s363 = scalar_lea.vmem %s4, %s362
        %s364 = smul.u32 8, %s21
        %s365 = smul.u32 8, %s21
        %p366 = scmp.lt.s32.totalorder %s365, 47
        %s367 = scalar_select %p366, %s365, 47
        %s368 = smul.addr %s367, 8
        %s369 = scalar_lea.vmem %s5, %s368
        %s370 = smul.u32 8, %s21
        %p372 = scmp.eq.s32.totalorder %s22, 0
        // Predicated region
        $region78: #{hccf_forward.5} parent=72 // pred_check
          %p373 = pneg %p372
        $region79: #{hccf_forward.5} parent=72 // pred_check_branch
          %375 = sbr.rel (%p373) target = $region81
        $region80: #{hccf_forward.5} parent=72 // pred_region
          %376 = vst [vmem:[#allocation2] sm:$0xff] 0.0
          %377 = vst [vmem:[#allocation2 + $0x8] sm:$0xff] 0.0
          %378 = vst [vmem:[#allocation2 + $0x10] sm:$0xff] 0.0
          %379 = vst [vmem:[#allocation2 + $0x18] sm:$0xff] 0.0
          %380 = vst [vmem:[#allocation2 + $0x20] sm:$0xff] 0.0
          %381 = vst [vmem:[#allocation2 + $0x28] sm:$0xff] 0.0
          %382 = vst [vmem:[#allocation2 + $0x30] sm:$0xff] 0.0
          %383 = vst [vmem:[#allocation2 + $0x38] sm:$0xff] 0.0
        $region81: #{hccf_forward.5} parent=72 // pred_fallthru
          _
        %v384 = vld [vmem:[#allocation2] sm:$0xff]
        %v385 = vld [vmem:[#allocation2 + $0x8] sm:$0xff]
        %v386 = vld [vmem:[#allocation2 + $0x10] sm:$0xff]
        %v387 = vld [vmem:[#allocation2 + $0x18] sm:$0xff]
        %v388 = vld [vmem:[#allocation2 + $0x20] sm:$0xff]
        %v389 = vld [vmem:[#allocation2 + $0x28] sm:$0xff]
        %v390 = vld [vmem:[#allocation2 + $0x30] sm:$0xff]
        %v391 = vld [vmem:[#allocation2 + $0x38] sm:$0xff]
        %v392 = vld [vmem:[%s306] sm:$0xf]
        %v393 = vld [vmem:[%s306 + $0x4] sm:$0xf]
        %v394 = vld [vmem:[%s306 + $0x8] sm:$0xf]
        %v395 = vld [vmem:[%s306 + $0xc] sm:$0xf]
        %v396 = vld [vmem:[%s306 + $0x10] sm:$0xf]
        %v397 = vld [vmem:[%s306 + $0x14] sm:$0xf]
        %v398 = vld [vmem:[%s306 + $0x18] sm:$0xf]
        %v399 = vld [vmem:[%s306 + $0x1c] sm:$0xf]
        %v400 = vld [vmem:[%s351] sm:$0xf]
        %v401 = vld [vmem:[%s351 + $0x4] sm:$0xf]
        %v402 = vld [vmem:[%s351 + $0x8] sm:$0xf]
        %v403 = vld [vmem:[%s351 + $0xc] sm:$0xf]
        %v404 = vld [vmem:[%s351 + $0x10] sm:$0xf]
        %v405 = vld [vmem:[%s351 + $0x14] sm:$0xf]
        %v406 = vld [vmem:[%s351 + $0x18] sm:$0xf]
        %v407 = vld [vmem:[%s351 + $0x1c] sm:$0xf]
        %v408 = vld [vmem:[%s351 + $0x20] sm:$0xf]
        %v409 = vld [vmem:[%s351 + $0x24] sm:$0xf]
        %v410 = vld [vmem:[%s351 + $0x28] sm:$0xf]
        %v411 = vld [vmem:[%s351 + $0x2c] sm:$0xf]
        %v412 = vld [vmem:[%s351 + $0x30] sm:$0xf]
        %v413 = vld [vmem:[%s351 + $0x34] sm:$0xf]
        %v414 = vld [vmem:[%s351 + $0x38] sm:$0xf]
        %v415 = vld [vmem:[%s351 + $0x3c] sm:$0xf]
        %v424 = vunpack.c.l.b16 %v392
        %v425 = vunpack.c.l.b16 %v393
        %v426 = vunpack.c.l.b16 %v394
        %v427 = vunpack.c.l.b16 %v395
        %v428 = vunpack.c.l.b16 %v396
        %v429 = vunpack.c.l.b16 %v397
        %v430 = vunpack.c.l.b16 %v398
        %v431 = vunpack.c.l.b16 %v399
        %v432 = vpack.c.b16 %v425, %v424
        %v433 = vpack.c.b16 %v427, %v426
        %v434 = vpack.c.b16 %v429, %v428
        %v435 = vpack.c.b16 %v431, %v430
        %v456 = vunpack.c.l.b16 %v400
        %v457 = vunpack.c.l.b16 %v401
        %v458 = vunpack.c.l.b16 %v402
        %v459 = vunpack.c.l.b16 %v403
        %v460 = vunpack.c.l.b16 %v404
        %v461 = vunpack.c.l.b16 %v405
        %v462 = vunpack.c.l.b16 %v406
        %v463 = vunpack.c.l.b16 %v407
        %v464 = vunpack.c.l.b16 %v408
        %v465 = vunpack.c.l.b16 %v409
        %v466 = vunpack.c.l.b16 %v410
        %v467 = vunpack.c.l.b16 %v411
        %v468 = vunpack.c.l.b16 %v412
        %v469 = vunpack.c.l.b16 %v413
        %v470 = vunpack.c.l.b16 %v414
        %v471 = vunpack.c.l.b16 %v415
        %v472 = vpack.c.b16 %v457, %v456
        %v473 = vpack.c.b16 %v459, %v458
        %v474 = vpack.c.b16 %v461, %v460
        %v475 = vpack.c.b16 %v463, %v462
        %v476 = vpack.c.b16 %v465, %v464
        %v477 = vpack.c.b16 %v467, %v466
        %v478 = vpack.c.b16 %v469, %v468
        %v479 = vpack.c.b16 %v471, %v470
        %488 = vmatprep.subr.bf16.mxu0 0
        %489 = vmatpush1.bf16.msra.mxu0 %v472
        %490 = vmatprep.subr.bf16.mxu0 0
        %491 = vmatpush1.bf16.msra.mxu0 %v473
        %492 = vmatprep.subr.bf16.mxu0 0
        %493 = vmatpush1.bf16.msra.mxu0 %v474
        %494 = vmatprep.subr.bf16.mxu0 0
        %495 = vmatpush1.bf16.msra.mxu0 %v475
        %496 = vmatprep.subr.bf16.mxu0 0
        %497 = vmatpush1.bf16.msra.mxu0 %v476
        %498 = vmatprep.subr.bf16.mxu0 0
        %499 = vmatpush1.bf16.msra.mxu0 %v477
        %500 = vmatprep.subr.bf16.mxu0 0
        %501 = vmatpush1.bf16.msra.mxu0 %v478
        %502 = vmatprep.subr.bf16.mxu0 0
        %503 = vmatpush1.bf16.msra.mxu0 %v479
        %504 = vmatprep.subr.bf16.mxu0 0
        %505 = vmatpush1.bf16.msra.mxu0 0
        %506 = vmatprep.subr.bf16.mxu0 0
        %507 = vmatpush1.bf16.msra.mxu0 0
        %508 = vmatprep.subr.bf16.mxu0 0
        %509 = vmatpush1.bf16.msra.mxu0 0
        %510 = vmatprep.subr.bf16.mxu0 0
        %511 = vmatpush1.bf16.msra.mxu0 0
        %512 = vmatprep.subr.bf16.mxu0 0
        %513 = vmatpush1.bf16.msra.mxu0 0
        %514 = vmatprep.subr.bf16.mxu0 0
        %515 = vmatpush1.bf16.msra.mxu0 0
        %516 = vmatprep.subr.bf16.mxu0 0
        %517 = vmatpush1.bf16.msra.mxu0 0
        %518 = vmatprep.subr.bf16.mxu0 0
        %519 = vmatpush1.bf16.msra.mxu0 0
        %520 = vmatprep.mubr.bf16.mxu0 0
        %521 = vmatmul.mubr.bf16.gmra.mrb[0].mxu0 %v432
        %v522 = vpop.f32.mrb[0].mxu0
        %v523 = vadd.f32 0.0, %v522
        %v524 = vpop.f32.mrb[0].mxu0
        %v525 = vpop.f32.mrb[0].mxu0
        %v526 = vadd.f32 0.0, %v525
        %v527 = vpop.f32.mrb[0].mxu0
        %528 = vmatprep.mubr.bf16.mxu0 0
        %529 = vmatmul.mubr.bf16.gmra.mrb[0].mxu0 %v433
        %v530 = vpop.f32.mrb[0].mxu0
        %v531 = vadd.f32 0.0, %v530
        %v532 = vpop.f32.mrb[0].mxu0
        %v533 = vpop.f32.mrb[0].mxu0
        %v534 = vadd.f32 0.0, %v533
        %v535 = vpop.f32.mrb[0].mxu0
        %536 = vmatprep.mubr.bf16.mxu0 0
        %537 = vmatmul.mubr.bf16.gmra.mrb[0].mxu0 %v434
        %v538 = vpop.f32.mrb[0].mxu0
        %v539 = vadd.f32 0.0, %v538
        %v540 = vpop.f32.mrb[0].mxu0
        %v541 = vpop.f32.mrb[0].mxu0
        %v542 = vadd.f32 0.0, %v541
        %v543 = vpop.f32.mrb[0].mxu0
        %544 = vmatprep.mubr.bf16.mxu0 0
        %545 = vmatmul.mubr.bf16.gmra.mrb[0].mxu0 %v435
        %v546 = vpop.f32.mrb[0].mxu0
        %v547 = vadd.f32 0.0, %v546
        %v548 = vpop.f32.mrb[0].mxu0
        %v549 = vpop.f32.mrb[0].mxu0
        %v550 = vadd.f32 0.0, %v549
        %v551 = vpop.f32.mrb[0].mxu0
        %552 = vdwg.mxu0
        %v553 = vadd.f32 %v384, %v523
        %v554 = vadd.f32 %v385, %v526
        %v555 = vadd.f32 %v386, %v531
        %v556 = vadd.f32 %v387, %v534
        %v557 = vadd.f32 %v388, %v539
        %v558 = vadd.f32 %v389, %v542
        %v559 = vadd.f32 %v390, %v547
        %v560 = vadd.f32 %v391, %v550
        %561 = vst [vmem:[#allocation2] sm:$0xff] %v553
        %562 = vst [vmem:[#allocation2 + $0x8] sm:$0xff] %v554
        %563 = vst [vmem:[#allocation2 + $0x10] sm:$0xff] %v555
        %564 = vst [vmem:[#allocation2 + $0x18] sm:$0xff] %v556
        %565 = vst [vmem:[#allocation2 + $0x20] sm:$0xff] %v557
        %566 = vst [vmem:[#allocation2 + $0x28] sm:$0xff] %v558
        %567 = vst [vmem:[#allocation2 + $0x30] sm:$0xff] %v559
        %568 = vst [vmem:[#allocation2 + $0x38] sm:$0xff] %v560
        %p569 = scmp.eq.s32.totalorder %s22, 2
        // Predicated region
        $region82: #{hccf_forward.5} parent=72 // pred_check
          %p570 = pneg %p569
        $region83: #{hccf_forward.5} parent=72 // pred_check_branch
          %572 = sbr.rel (%p570) target = $region85
        $region84: #{hccf_forward.5} parent=72 // pred_region
          %v573 = vld [vmem:[#allocation2] sm:$0xff]
          %v574 = vld [vmem:[#allocation2 + $0x8] sm:$0xff]
          %v575 = vld [vmem:[#allocation2 + $0x10] sm:$0xff]
          %v576 = vld [vmem:[#allocation2 + $0x18] sm:$0xff]
          %v577 = vld [vmem:[#allocation2 + $0x20] sm:$0xff]
          %v578 = vld [vmem:[#allocation2 + $0x28] sm:$0xff]
          %v579 = vld [vmem:[#allocation2 + $0x30] sm:$0xff]
          %v580 = vld [vmem:[#allocation2 + $0x38] sm:$0xff]
          %581 = vst [vmem:[%s363] sm:$0xff] %v573
          %582 = vst [vmem:[%s363 + $0x8] sm:$0xff] %v574
          %583 = vst [vmem:[%s363 + $0x10] sm:$0xff] %v575
          %584 = vst [vmem:[%s363 + $0x18] sm:$0xff] %v576
          %585 = vst [vmem:[%s363 + $0x20] sm:$0xff] %v577
          %586 = vst [vmem:[%s363 + $0x28] sm:$0xff] %v578
          %587 = vst [vmem:[%s363 + $0x30] sm:$0xff] %v579
          %588 = vst [vmem:[%s363 + $0x38] sm:$0xff] %v580
          %v589 = vld [vmem:[%s357] sm:$0xf]
          %v590 = vld [vmem:[%s357 + $0x4] sm:$0xf]
          %v591 = vld [vmem:[%s357 + $0x8] sm:$0xf]
          %v592 = vld [vmem:[%s357 + $0xc] sm:$0xf]
          %v593 = vld [vmem:[%s357 + $0x10] sm:$0xf]
          %v594 = vld [vmem:[%s357 + $0x14] sm:$0xf]
          %v595 = vld [vmem:[%s357 + $0x18] sm:$0xf]
          %v596 = vld [vmem:[%s357 + $0x1c] sm:$0xf]
          %v597 = vld [vmem:[%s3] sm:$0xf]
          %v598 = vld [vmem:[%s3 + $0x4] sm:$0xf]
          %v599 = vld [vmem:[%s3 + $0x8] sm:$0xf]
          %v600 = vld [vmem:[%s3 + $0xc] sm:$0xf]
          %v601 = vld [vmem:[%s3 + $0x10] sm:$0xf]
          %v602 = vld [vmem:[%s3 + $0x14] sm:$0xf]
          %v603 = vld [vmem:[%s3 + $0x18] sm:$0xf]
          %v604 = vld [vmem:[%s3 + $0x1c] sm:$0xf]
          %v605 = vld [vmem:[%s3 + $0x20] sm:$0xf]
          %v606 = vld [vmem:[%s3 + $0x24] sm:$0xf]
          %v607 = vld [vmem:[%s3 + $0x28] sm:$0xf]
          %v608 = vld [vmem:[%s3 + $0x2c] sm:$0xf]
          %v609 = vld [vmem:[%s3 + $0x30] sm:$0xf]
          %v610 = vld [vmem:[%s3 + $0x34] sm:$0xf]
          %v611 = vld [vmem:[%s3 + $0x38] sm:$0xf]
          %v612 = vld [vmem:[%s3 + $0x3c] sm:$0xf]
          %v621 = vunpack.c.l.b16 %v589
          %v622 = vunpack.c.l.b16 %v590
          %v623 = vunpack.c.l.b16 %v591
          %v624 = vunpack.c.l.b16 %v592
          %v625 = vunpack.c.l.b16 %v593
          %v626 = vunpack.c.l.b16 %v594
          %v627 = vunpack.c.l.b16 %v595
          %v628 = vunpack.c.l.b16 %v596
          %v629 = vpack.c.b16 %v622, %v621
          %v630 = vpack.c.b16 %v624, %v623
          %v631 = vpack.c.b16 %v626, %v625
          %v632 = vpack.c.b16 %v628, %v627
          %v653 = vunpack.c.l.b16 %v597
          %v654 = vunpack.c.l.b16 %v598
          %v655 = vunpack.c.l.b16 %v599
          %v656 = vunpack.c.l.b16 %v600
          %v657 = vunpack.c.l.b16 %v601
          %v658 = vunpack.c.l.b16 %v602
          %v659 = vunpack.c.l.b16 %v603
          %v660 = vunpack.c.l.b16 %v604
          %v661 = vunpack.c.l.b16 %v605
          %v662 = vunpack.c.l.b16 %v606
          %v663 = vunpack.c.l.b16 %v607
          %v664 = vunpack.c.l.b16 %v608
          %v665 = vunpack.c.l.b16 %v609
          %v666 = vunpack.c.l.b16 %v610
          %v667 = vunpack.c.l.b16 %v611
          %v668 = vunpack.c.l.b16 %v612
          %v669 = vpack.c.b16 %v654, %v653
          %v670 = vpack.c.b16 %v656, %v655
          %v671 = vpack.c.b16 %v658, %v657
          %v672 = vpack.c.b16 %v660, %v659
          %v673 = vpack.c.b16 %v662, %v661
          %v674 = vpack.c.b16 %v664, %v663
          %v675 = vpack.c.b16 %v666, %v665
          %v676 = vpack.c.b16 %v668, %v667
          %685 = vmatprep.subr.bf16.mxu0 0
          %686 = vmatpush1.bf16.msra.mxu0 %v669
          %687 = vmatprep.subr.bf16.mxu0 0
          %688 = vmatpush1.bf16.msra.mxu0 %v670
          %689 = vmatprep.subr.bf16.mxu0 0
          %690 = vmatpush1.bf16.msra.mxu0 %v671
          %691 = vmatprep.subr.bf16.mxu0 0
          %692 = vmatpush1.bf16.msra.mxu0 %v672
          %693 = vmatprep.subr.bf16.mxu0 0
          %694 = vmatpush1.bf16.msra.mxu0 %v673
          %695 = vmatprep.subr.bf16.mxu0 0
          %696 = vmatpush1.bf16.msra.mxu0 %v674
          %697 = vmatprep.subr.bf16.mxu0 0
          %698 = vmatpush1.bf16.msra.mxu0 %v675
          %699 = vmatprep.subr.bf16.mxu0 0
          %700 = vmatpush1.bf16.msra.mxu0 %v676
          %701 = vmatprep.subr.bf16.mxu0 0
          %702 = vmatpush1.bf16.msra.mxu0 0
          %703 = vmatprep.subr.bf16.mxu0 0
          %704 = vmatpush1.bf16.msra.mxu0 0
          %705 = vmatprep.subr.bf16.mxu0 0
          %706 = vmatpush1.bf16.msra.mxu0 0
          %707 = vmatprep.subr.bf16.mxu0 0
          %708 = vmatpush1.bf16.msra.mxu0 0
          %709 = vmatprep.subr.bf16.mxu0 0
          %710 = vmatpush1.bf16.msra.mxu0 0
          %711 = vmatprep.subr.bf16.mxu0 0
          %712 = vmatpush1.bf16.msra.mxu0 0
          %713 = vmatprep.subr.bf16.mxu0 0
          %714 = vmatpush1.bf16.msra.mxu0 0
          %715 = vmatprep.subr.bf16.mxu0 0
          %716 = vmatpush1.bf16.msra.mxu0 0
          %717 = vmatprep.mubr.bf16.mxu0 0
          %718 = vmatmul.mubr.bf16.gmra.mrb[0].mxu0 %v629
          %v719 = vpop.f32.mrb[0].mxu0
          %v720 = vadd.f32 0.0, %v719
          %v721 = vpop.f32.mrb[0].mxu0
          %v722 = vpop.f32.mrb[0].mxu0
          %v723 = vadd.f32 0.0, %v722
          %v724 = vpop.f32.mrb[0].mxu0
          %725 = vmatprep.mubr.bf16.mxu0 0
          %726 = vmatmul.mubr.bf16.gmra.mrb[0].mxu0 %v630
          %v727 = vpop.f32.mrb[0].mxu0
          %v728 = vadd.f32 0.0, %v727
          %v729 = vpop.f32.mrb[0].mxu0
          %v730 = vpop.f32.mrb[0].mxu0
          %v731 = vadd.f32 0.0, %v730
          %v732 = vpop.f32.mrb[0].mxu0
          %733 = vmatprep.mubr.bf16.mxu0 0
          %734 = vmatmul.mubr.bf16.gmra.mrb[0].mxu0 %v631
          %v735 = vpop.f32.mrb[0].mxu0
          %v736 = vadd.f32 0.0, %v735
          %v737 = vpop.f32.mrb[0].mxu0
          %v738 = vpop.f32.mrb[0].mxu0
          %v739 = vadd.f32 0.0, %v738
          %v740 = vpop.f32.mrb[0].mxu0
          %741 = vmatprep.mubr.bf16.mxu0 0
          %742 = vmatmul.mubr.bf16.gmra.mrb[0].mxu0 %v632
          %v743 = vpop.f32.mrb[0].mxu0
          %v744 = vadd.f32 0.0, %v743
          %v745 = vpop.f32.mrb[0].mxu0
          %v746 = vpop.f32.mrb[0].mxu0
          %v747 = vadd.f32 0.0, %v746
          %v748 = vpop.f32.mrb[0].mxu0
          %749 = vdwg.mxu0
          %750 = vst [vmem:[%s369] sm:$0xff] %v720
          %751 = vst [vmem:[%s369 + $0x8] sm:$0xff] %v723
          %752 = vst [vmem:[%s369 + $0x10] sm:$0xff] %v728
          %753 = vst [vmem:[%s369 + $0x18] sm:$0xff] %v731
          %754 = vst [vmem:[%s369 + $0x20] sm:$0xff] %v736
          %755 = vst [vmem:[%s369 + $0x28] sm:$0xff] %v739
          %756 = vst [vmem:[%s369 + $0x30] sm:$0xff] %v744
          %757 = vst [vmem:[%s369 + $0x38] sm:$0xff] %v747
        $region85: #{hccf_forward.5} parent=72 // pred_fallthru
          _
        %s758 = smul.u32 8, %s21
        %p759 = scmp.lt.s32.totalorder %s758, 47
        %s760 = scalar_select %p759, %s758, 47
        %s761 = smul.addr %s760, 8
        %s762 = scalar_lea.vmem %s4, %s761
        %s763 = smul.u32 8, %s21
        %p764 = scmp.lt.s32.totalorder %s763, 47
        %s765 = scalar_select %p764, %s763, 47
        %s766 = smul.addr %s765, 8
        %s767 = scalar_lea.vmem %s5, %s766
        // Predicated region
        $region86: #{hccf_forward.5} parent=72 // pred_check
          %p768 = pneg %p148
        $region87: #{hccf_forward.5} parent=72 // pred_check_branch
          %770 = sbr.rel (%p768) target = $region89
        $region88: #{hccf_forward.5} parent=72 // pred_region
          %s771 = smul.u32 8, %s21
        $region89: #{hccf_forward.5} parent=72 // pred_fallthru
          _
        // Predicated region
        $region90: #{hccf_forward.5} parent=72 // pred_check
          %p772 = pneg %p174
        $region91: #{hccf_forward.5} parent=72 // pred_check_branch
          %774 = sbr.rel (%p772) target = $region93
        $region92: #{hccf_forward.5} parent=72 // pred_region
          %s775 = smul.u32 8, %s21
        $region93: #{hccf_forward.5} parent=72 // pred_fallthru
          _
      $region73: #{hccf_forward.5} parent=5 // pred_fallthru
        _
      %p776 = scmp.le.s32.totalorder 2, %s12
      // Predicated region
      $region94: #{hccf_forward.5} parent=5 // pred_check
        %p777 = pneg %p776
      $region95: #{hccf_forward.5} parent=5 // pred_check_branch
        %779 = sbr.rel (%p777) target = $region97
      $region96: #{hccf_forward.5} parent=5 // pred_region
        %s780 = ssub.s32 %s12, 2
        // Predicated region
        $region98: #{hccf_forward.5} parent=96 // pred_check
          %p781 = pneg %p154
        $region99: #{hccf_forward.5} parent=96 // pred_check_branch
          %783 = sbr.rel (%p781) target = $region101
        $region100: #{hccf_forward.5} parent=96 // pred_region
          %s784 = smul.u32 8, %s23
          %p785 = scmp.lt.s32.totalorder %s784, 47
          %s786 = scalar_select %p785, %s784, 47
          %s787 = smul.addr %s786, 8
          %s788 = scalar_lea.vmem %s4, %s787
        $region101: #{hccf_forward.5} parent=96 // pred_fallthru
          _
        // Predicated region
        $region102: #{hccf_forward.5} parent=96 // pred_check
          %p789 = pneg %p180
        $region103: #{hccf_forward.5} parent=96 // pred_check_branch
          %791 = sbr.rel (%p789) target = $region105
        $region104: #{hccf_forward.5} parent=96 // pred_region
          %s792 = smul.u32 8, %s23
          %p793 = scmp.lt.s32.totalorder %s792, 47
          %s794 = scalar_select %p793, %s792, 47
          %s795 = smul.addr %s794, 8
          %s796 = scalar_lea.vmem %s5, %s795
        $region105: #{hccf_forward.5} parent=96 // pred_fallthru
          _
      $region97: #{hccf_forward.5} parent=5 // pred_fallthru
        _
    $region6: #{hccf_forward.5} parent=1 // loop_footer
      %s16 = sadd.s32 1, %s12
    $region7: #{hccf_forward.5} parent=1 // loop_footer_branch
      %11 = sbr.rel target = $region3
    $region8: #{hccf_forward.5} parent=1 // loop_exit
      _

</llo_original>
